<compile_context>
chip_gen: v5e
topology: v5e:2x2
jax: 0.10.0
libtpu: 0.0.40
codegen_flags: <defaults>
</compile_context>

<pallas_src>
import jax
import jax.numpy as jnp
from jax.experimental import pallas as pl
from jax.experimental.pallas import tpu as pltpu


# ---------------------------------------------------------------------------
# Small static helpers (Python ints only).
# ---------------------------------------------------------------------------
def _cdiv(a, b):
    return (a + b - 1) // b


def _round_up(x, m):
    return (x + m - 1) // m * m


def _choose_row_tile(n, cap=4096):
    """Large row tiles for the token MLP (amortize ~0.35us/step); keep >=2
    grid steps for megacore when n is large."""
    if n < 512:
        return n
    return min(cap, _round_up(_cdiv(n, 2), 256))


def _choose_bt_tile(bt, cap=16):
    """cdiv tiling over the BT axis: largest tile <= cap with >= 2 grid steps."""
    if bt < 2:
        return max(bt, 1)
    return min(cap, _cdiv(bt, 2))


def _choose_col_tile(ps, cap=512):
    """Lane-dense (multiple of 128) column tile that divides pred_len*S."""
    if ps % 128 != 0 or ps <= cap:
        return ps
    best = 128
    for cand in range(128, cap + 1, 128):
        if ps % cand == 0:
            best = cand
    return best


def _choose_k_tile(ts, cap=2048):
    """Contraction tile over T*S: divisor of ts, multiple of 8, <= cap."""
    if ts <= cap:
        return ts
    for cand in range(cap, 0, -8):
        if cand % 8 == 0 and ts % cand == 0:
            return cand
    return ts


# ---------------------------------------------------------------------------
# Kernel A: fused per-token MLP stack
#   Spatiomlp (Lin D->2D, Lin 2D->D, ReLU) ->
#   Temporalmlp (Lin D->2D, Lin 2D->D, ReLU) ->
#   projection (Lin D->D)
# All three are per-token ops over D, so the permutes in the torch code are
# pure layout and the whole stack fuses over the flattened token axis.
# ---------------------------------------------------------------------------
def token_mlp_kernel(x_ref, w1s_ref, b1s_ref, w2s_ref, b2s_ref,
                     w1t_ref, b1t_ref, w2t_ref, b2t_ref,
                     wp_ref, bp_ref, o_ref):
    bf = jnp.bfloat16
    x = x_ref[...]                                                   # (tm, D) f32
    # Spatiomlp
    h = jnp.dot(x.astype(bf), w1s_ref[...],
                preferred_element_type=jnp.float32) + b1s_ref[...]
    y = jnp.dot(h.astype(bf), w2s_ref[...],
                preferred_element_type=jnp.float32) + b2s_ref[...]
    y = jnp.maximum(y, 0.0)
    # Temporalmlp
    h = jnp.dot(y.astype(bf), w1t_ref[...],
                preferred_element_type=jnp.float32) + b1t_ref[...]
    y = jnp.dot(h.astype(bf), w2t_ref[...],
                preferred_element_type=jnp.float32) + b2t_ref[...]
    y = jnp.maximum(y, 0.0)
    # projection
    o_ref[...] = jnp.dot(y.astype(bf), wp_ref[...],
                         preferred_element_type=jnp.float32) + bp_ref[...]


def run_token_mlp(tokens, p):
    N, D = tokens.shape
    H = p["w1s"].shape[1]
    tm = _choose_row_tile(N)
    bf = jnp.bfloat16
    full = lambda i: (0, 0)
    return pl.pallas_call(
        token_mlp_kernel,
        out_shape=jax.ShapeDtypeStruct((N, D), jnp.float32),
        grid=(_cdiv(N, tm),),          # cdiv grid: no jnp.pad HBM pass; edge writes masked
        in_specs=[
            pl.BlockSpec((tm, D), lambda i: (i, 0)),
            pl.BlockSpec((D, H), full), pl.BlockSpec((1, H), full),
            pl.BlockSpec((H, D), full), pl.BlockSpec((1, D), full),
            pl.BlockSpec((D, H), full), pl.BlockSpec((1, H), full),
            pl.BlockSpec((H, D), full), pl.BlockSpec((1, D), full),
            pl.BlockSpec((D, D), full), pl.BlockSpec((1, D), full),
        ],
        out_specs=pl.BlockSpec((tm, D), lambda i: (i, 0)),
        compiler_params=pltpu.CompilerParams(dimension_semantics=("parallel",)),
    )(tokens,
      p["w1s"].astype(bf), p["b1s"], p["w2s"].astype(bf), p["b2s"],
      p["w1t"].astype(bf), p["b1t"], p["w2t"].astype(bf), p["b2t"],
      p["wp"].astype(bf), p["bp"])


# ---------------------------------------------------------------------------
# Kernel B: ChannelGuidedAttention gate + gated fusion + 1x1 Conv2d.
#   Inputs:  H_local  in its natural channel-last layout (BT, S, D)  (free view)
#            H_global in its natural NCHW layout        (BT, D, S)  (free view)
#   Output:  H_refined in NCHW (BT, D, S) -- required for the downstream
#            bug-for-bug raw reshape into Kernel C.
#   gate  = sigmoid( Conv1x1( AdaptiveAvgPool2d(local + global) ) )  per sample
#   fused = gate*local + (1-gate)*global == global + gate*(local - global)
#   out   = Conv1x1(fused)
# The two layout swaps live INSIDE the kernel as XLU transposes of 128x32
# tiles (XLU is otherwise idle), so no XLA transpose passes over HBM.
# The conv is one flattened (bt*S, D) @ (D, D) matmul (no per-sample loop).
# ---------------------------------------------------------------------------
def cga_fuse_kernel(loc_ref, glo_ref, wg_ref, bg_ref, wc_ref, bc_ref, o_ref):
    bf = jnp.bfloat16
    loc = loc_ref[...]                                   # (bt, S, D) channel-last f32
    glo = jnp.transpose(glo_ref[...], (0, 2, 1))         # (bt, D, S) -> (bt, S, D)
    # AdaptiveAvgPool2d(1) of (loc + glo): mean is linear -> no fin materialized.
    pooled = jnp.mean(loc, axis=1) + jnp.mean(glo, axis=1)           # (bt, D)
    gate = jax.nn.sigmoid(
        jnp.dot(pooled.astype(bf), wg_ref[...],
                preferred_element_type=jnp.float32) + bg_ref[...])   # (bt, D)
    fused = glo + gate[:, None, :] * (loc - glo)                     # (bt, S, D)
    bt, S, D = fused.shape
    conv = jnp.dot(fused.reshape(bt * S, D).astype(bf), wc_ref[...],
                   preferred_element_type=jnp.float32) + bc_ref[...]  # (bt*S, D)
    o_ref[...] = jnp.transpose(conv.reshape(bt, S, D), (0, 2, 1))     # store NCHW


def run_cga_fuse(local_cl, glob_nchw, p):
    BT, S, D = local_cl.shape
    bt = _choose_bt_tile(BT)
    bf = jnp.bfloat16
    full = lambda i: (0, 0)
    tile = lambda i: (i, 0, 0)
    return pl.pallas_call(
        cga_fuse_kernel,
        out_shape=jax.ShapeDtypeStruct((BT, D, S), jnp.float32),
        grid=(_cdiv(BT, bt),),
        in_specs=[
            pl.BlockSpec((bt, S, D), tile),              # H_local (channel-last)
            pl.BlockSpec((bt, D, S), tile),              # H_global (NCHW)
            pl.BlockSpec((D, D), full), pl.BlockSpec((1, D), full),
            pl.BlockSpec((D, D), full), pl.BlockSpec((1, D), full),
        ],
        out_specs=pl.BlockSpec((bt, D, S), tile),
        compiler_params=pltpu.CompilerParams(dimension_semantics=("parallel",)),
    )(local_cl, glob_nchw,
      p["w_cga"].astype(bf), p["b_cga"],                 # (in, out) pre-transposed
      p["w_conv"].astype(bf), p["b_conv"])               # (in, out) pre-transposed


# ---------------------------------------------------------------------------
# Kernel C: sequence_projection + ReLU + output_regressor, fused, reading the
# RAW (B, T*S, D) view of H_refined (free reinterpretation of the NCHW array;
# matches torch's .reshape(B, T*S, D)).  The torch .permute(0, 2, 1) is
# absorbed by contracting over the T*S axis in-kernel.
#   seq[d, n] = sum_m X[b, m, d] * W_seq[m, n]        (MXU, K-tiled over T*S)
#   out[b, n] = sum_d w_reg[d] * relu(seq[d, n] + b_seq[n]) + b_reg
# The regressor is a VPU multiply + sublane reduce (no M=1 MXU matmul).
# Output is a lane-dense (B, 1, pred_len*S) slab.
# ---------------------------------------------------------------------------
def seq_reg_kernel(x_ref, wseq_ref, bseq_ref, wreg_ref, breg_ref, o_ref, acc_ref):
    kk = pl.program_id(2)

    @pl.when(kk == 0)
    def _init():
        acc_ref[...] = jnp.zeros_like(acc_ref)

    x_t = jnp.transpose(x_ref[0], (1, 0))                 # (tk, D) -> (D, tk) f32
    acc_ref[...] += jnp.dot(x_t.astype(jnp.bfloat16), wseq_ref[...],
                            preferred_element_type=jnp.float32)       # (D, tn)

    @pl.when(kk == pl.num_programs(2) - 1)
    def _finalize():
        seq = jnp.maximum(acc_ref[...] + bseq_ref[...], 0.0)          # (D, tn)
        o_ref[0] = (jnp.sum(wreg_ref[...] * seq, axis=0, keepdims=True)
                    + breg_ref[...])                                  # (1, tn)


def run_seq_projection_regressor(x_raw, p):
    B, TS, D = x_raw.shape
    PS = p["w_seq"].shape[1]
    tn = _choose_col_tile(PS)
    tk = _choose_k_tile(TS)
    nj, nk = PS // tn, TS // tk
    bf = jnp.bfloat16
    return pl.pallas_call(
        seq_reg_kernel,
        out_shape=jax.ShapeDtypeStruct((B, 1, PS), jnp.float32),
        grid=(nj, B, nk),                                  # reduction axis (T*S) last
        in_specs=[
            pl.BlockSpec((1, tk, D), lambda j, b, kk: (b, kk, 0)),
            pl.BlockSpec((tk, tn), lambda j, b, kk: (kk, j)),
            pl.BlockSpec((1, tn), lambda j, b, kk: (0, j)),
            pl.BlockSpec((D, 1), lambda j, b, kk: (0, 0)),
            pl.BlockSpec((1, 1), lambda j, b, kk: (0, 0)),
        ],
        out_specs=pl.BlockSpec((1, 1, tn), lambda j, b, kk: (b, 0, j)),
        scratch_shapes=[pltpu.VMEM((D, tn), jnp.float32)],
        compiler_params=pltpu.CompilerParams(
            dimension_semantics=("parallel", "parallel", "arbitrary")),
    )(x_raw, p["w_seq"].astype(bf), p["b_seq"], p["w_reg"], p["b_reg"])


# ---------------------------------------------------------------------------
# Forward pass (thin plain-JAX glue; all HBM-touching hot paths are kernels,
# and every inter-kernel layout change is a FREE row-major reinterpretation).
# ---------------------------------------------------------------------------
def pgot_forward(params, x_enc, x_mark_enc, space_mark_x, *, l, k, pred_len):
    B, T, S = x_enc.shape
    assert S == l * k
    D = params["wp"].shape[0]

    # TODO(synk): DataEmbeddingCONV definition was not provided; deterministic
    # linear value/temporal-mark/spatial-mark embedding stand-in.
    H_emb = (x_enc[..., None] * params["w_val"][None, None, None, :]
             + jnp.einsum("btm,md->btd", x_mark_enc, params["w_mark"])[:, :, None, :]
             + jnp.einsum("sm,md->sd", space_mark_x, params["w_space"])[None, None, :, :])
    H_emb = H_emb.astype(jnp.float32)                                   # (B, T, S, D)

    # TODO(synk): Encoder / ConditionedAttention / compute_optimal_transport /
    # build_grid_adjacency definitions were not provided; encoder == identity
    # stand-in. H_local stays in its natural channel-last layout (free view);
    # the reference's permute(0,1,3,2) into NCHW is fused into Kernel B.
    h_local_cl = H_emb.reshape(B * T, S, D)                             # free view

    # Spatiomlp -> Temporalmlp -> projection, fused per-token Pallas kernel.
    tokens = H_emb.reshape(B * T * S, D)                                # free view
    proj_tokens = run_token_mlp(tokens, params)                         # (B*T*S, D)
    # torch: .reshape(B, T*S, D).reshape(B*T, D, l, k) is a raw row-major
    # reinterpretation (bug-for-bug). Free reshape in JAX, no copy.
    h_global_nchw = proj_tokens.reshape(B * T, D, S)

    # CGA gate + gated fusion + 1x1 conv; stores NCHW (BT, D, S).
    h_refined_nchw = run_cga_fuse(h_local_cl, h_global_nchw, params)    # (BT, D, S)

    # torch: H_refined.reshape(B, T*S, D) is again a raw reinterpretation of
    # the NCHW buffer (free); the permute(0,2,1) is absorbed into Kernel C.
    x_raw = h_refined_nchw.reshape(B, T * S, D)

    # sequence_projection + ReLU + output_regressor (fused kernel).
    y_out = run_seq_projection_regressor(x_raw, params)                 # (B, 1, pred*S)
    return y_out.reshape(B, pred_len, S)


# ---------------------------------------------------------------------------
# Deterministic parameter init. torch nn.Linear / 1x1-conv weights are stored
# pre-transposed as (in, out) for the kernels; w_reg stored as (D, 1) for the
# VPU reduce in Kernel C.
# ---------------------------------------------------------------------------
def init_params(key, D, H, T, S, pred_len, mark_dim, space_dim):
    keys = jax.random.split(key, 16)
    n = lambda kk, shape, s=0.05: (s * jax.random.normal(kk, shape)).astype(jnp.float32)
    z = lambda shape: jnp.zeros(shape, jnp.float32)
    return {
        # embedding stand-in
        "w_val": n(keys[0], (D,)),
        "w_mark": n(keys[1], (mark_dim, D)),
        "w_space": n(keys[2], (space_dim, D)),
        # Spatiomlp
        "w1s": n(keys[3], (D, H)), "b1s": z((1, H)),
        "w2s": n(keys[4], (H, D)), "b2s": z((1, D)),
        # Temporalmlp
        "w1t": n(keys[5], (D, H)), "b1t": z((1, H)),
        "w2t": n(keys[6], (H, D)), "b2t": z((1, D)),
        # projection
        "wp": n(keys[7], (D, D)), "bp": z((1, D)),
        # CGA gate Conv2d(D, D, 1)   (stored (in, out))
        "w_cga": n(keys[8], (D, D)), "b_cga": z((1, D)),
        # conv1x1 Conv2d(D, D, 1)    (stored (in, out))
        "w_conv": n(keys[9], (D, D)), "b_conv": z((1, D)),
        # sequence_projection Linear(T*S, pred_len*S)
        "w_seq": n(keys[10], (T * S, pred_len * S)), "b_seq": z((1, pred_len * S)),
        # output_regressor Linear(D, 1)  (stored (D, 1))
        "w_reg": n(keys[11], (D, 1)), "b_reg": z((1, 1)),
    }


if __name__ == "__main__":
    # Small shapes consistent with the module defaults l=16, k=8 (S = l*k = 128).
    B, T, l, k = 2, 4, 16, 8
    S = l * k                  # enc_in == number of spatial nodes
    D = 32                     # d_model (reduced from 64 for a small demo)
    H = 2 * D                  # MLP hidden
    pred_len = 4               # out_len; c_out = 1
    mark_dim, space_dim = 4, 2

    key = jax.random.PRNGKey(0)
    k_par, k_x, k_m, k_s = jax.random.split(key, 4)
    params = init_params(k_par, D, H, T, S, pred_len, mark_dim, space_dim)

    x_enc = jax.random.normal(k_x, (B, T, S), dtype=jnp.float32)
    x_mark_enc = jax.random.normal(k_m, (B, T, mark_dim), dtype=jnp.float32)
    space_mark_x = jax.random.normal(k_s, (S, space_dim), dtype=jnp.float32)

    y = pgot_forward(params, x_enc, x_mark_enc, space_mark_x,
                     l=l, k=k, pred_len=pred_len)
    jax.block_until_ready(y)
    assert y.shape == (B, pred_len, S), y.shape
    assert jnp.all(jnp.isfinite(y))
    print("KERNEL_OK")
</pallas_src>

<mosaic_0001>
module attributes {stable_mosaic.version = 11 : i64} {
  func.func @token_mlp_kernel(%arg0: i32, %arg1: memref<512x32xf32, #tpu.memory_space<vmem>>, %arg2: memref<32x64xbf16, #tpu.memory_space<vmem>>, %arg3: memref<1x64xf32, #tpu.memory_space<vmem>>, %arg4: memref<64x32xbf16, #tpu.memory_space<vmem>>, %arg5: memref<1x32xf32, #tpu.memory_space<vmem>>, %arg6: memref<32x64xbf16, #tpu.memory_space<vmem>>, %arg7: memref<1x64xf32, #tpu.memory_space<vmem>>, %arg8: memref<64x32xbf16, #tpu.memory_space<vmem>>, %arg9: memref<1x32xf32, #tpu.memory_space<vmem>>, %arg10: memref<32x32xbf16, #tpu.memory_space<vmem>>, %arg11: memref<1x32xf32, #tpu.memory_space<vmem>>, %arg12: memref<512x32xf32, #tpu.memory_space<vmem>>) attributes {dimension_semantics = [#tpu.dimension_semantics<parallel>], iteration_bounds = array<i64: 2>, scalar_prefetch = 0 : i64, scratch_operands = 0 : i64, tpu.core_type = #tpu.core_type<tc>, window_params = [{transform_indices = @transform_0, window_bounds = array<i64: 512, 32>}, {pipeline_mode = #tpu.pipeline_mode<synchronous>, transform_indices = @transform_1, window_bounds = array<i64: 32, 64>}, {pipeline_mode = #tpu.pipeline_mode<synchronous>, transform_indices = @transform_2, window_bounds = array<i64: 1, 64>}, {pipeline_mode = #tpu.pipeline_mode<synchronous>, transform_indices = @transform_3, window_bounds = array<i64: 64, 32>}, {pipeline_mode = #tpu.pipeline_mode<synchronous>, transform_indices = @transform_4, window_bounds = array<i64: 1, 32>}, {pipeline_mode = #tpu.pipeline_mode<synchronous>, transform_indices = @transform_5, window_bounds = array<i64: 32, 64>}, {pipeline_mode = #tpu.pipeline_mode<synchronous>, transform_indices = @transform_6, window_bounds = array<i64: 1, 64>}, {pipeline_mode = #tpu.pipeline_mode<synchronous>, transform_indices = @transform_7, window_bounds = array<i64: 64, 32>}, {pipeline_mode = #tpu.pipeline_mode<synchronous>, transform_indices = @transform_8, window_bounds = array<i64: 1, 32>}, {pipeline_mode = #tpu.pipeline_mode<synchronous>, transform_indices = @transform_9, window_bounds = array<i64: 32, 32>}, {pipeline_mode = #tpu.pipeline_mode<synchronous>, transform_indices = @transform_10, window_bounds = array<i64: 1, 32>}, {transform_indices = @transform_11, window_bounds = array<i64: 512, 32>}]} {
    %c0 = arith.constant 0 : index
    %c0_0 = arith.constant 0 : index
    %0 = vector.load %arg1[%c0, %c0_0] : memref<512x32xf32, #tpu.memory_space<vmem>>, vector<512x32xf32>
    %1 = arith.truncf %0 : vector<512x32xf32> to vector<512x32xbf16>
    %c0_1 = arith.constant 0 : index
    %c0_2 = arith.constant 0 : index
    %2 = vector.load %arg2[%c0_1, %c0_2] : memref<32x64xbf16, #tpu.memory_space<vmem>>, vector<32x64xbf16>
    %cst = arith.constant dense<0.000000e+00> : vector<512x64xf32>
    %3 = tpu.matmul %1, %2, %cst {dimension_numbers = #tpu.dot_dimension_numbers<[1], [0], [0], [1], [0, 0, 1, 1], [], []>} : vector<512x32xbf16>, vector<32x64xbf16>, vector<512x64xf32> -> vector<512x64xf32>
    %c0_3 = arith.constant 0 : index
    %c0_4 = arith.constant 0 : index
    %4 = vector.load %arg3[%c0_3, %c0_4] : memref<1x64xf32, #tpu.memory_space<vmem>>, vector<1x64xf32>
    %5 = vector.broadcast %4 : vector<1x64xf32> to vector<512x64xf32>
    %6 = arith.addf %3, %5 : vector<512x64xf32>
    %7 = arith.truncf %6 : vector<512x64xf32> to vector<512x64xbf16>
    %c0_5 = arith.constant 0 : index
    %c0_6 = arith.constant 0 : index
    %8 = vector.load %arg4[%c0_5, %c0_6] : memref<64x32xbf16, #tpu.memory_space<vmem>>, vector<64x32xbf16>
    %cst_7 = arith.constant dense<0.000000e+00> : vector<512x32xf32>
    %9 = tpu.matmul %7, %8, %cst_7 {dimension_numbers = #tpu.dot_dimension_numbers<[1], [0], [0], [1], [0, 0, 1, 1], [], []>} : vector<512x64xbf16>, vector<64x32xbf16>, vector<512x32xf32> -> vector<512x32xf32>
    %c0_8 = arith.constant 0 : index
    %c0_9 = arith.constant 0 : index
    %10 = vector.load %arg5[%c0_8, %c0_9] : memref<1x32xf32, #tpu.memory_space<vmem>>, vector<1x32xf32>
    %11 = vector.broadcast %10 : vector<1x32xf32> to vector<512x32xf32>
    %12 = arith.addf %9, %11 : vector<512x32xf32>
    %cst_10 = arith.constant 0.000000e+00 : f32
    %13 = vector.broadcast %cst_10 : f32 to vector<512x32xf32>
    %14 = arith.maximumf %12, %13 : vector<512x32xf32>
    %15 = arith.truncf %14 : vector<512x32xf32> to vector<512x32xbf16>
    %c0_11 = arith.constant 0 : index
    %c0_12 = arith.constant 0 : index
    %16 = vector.load %arg6[%c0_11, %c0_12] : memref<32x64xbf16, #tpu.memory_space<vmem>>, vector<32x64xbf16>
    %cst_13 = arith.constant dense<0.000000e+00> : vector<512x64xf32>
    %17 = tpu.matmul %15, %16, %cst_13 {dimension_numbers = #tpu.dot_dimension_numbers<[1], [0], [0], [1], [0, 0, 1, 1], [], []>} : vector<512x32xbf16>, vector<32x64xbf16>, vector<512x64xf32> -> vector<512x64xf32>
    %c0_14 = arith.constant 0 : index
    %c0_15 = arith.constant 0 : index
    %18 = vector.load %arg7[%c0_14, %c0_15] : memref<1x64xf32, #tpu.memory_space<vmem>>, vector<1x64xf32>
    %19 = vector.broadcast %18 : vector<1x64xf32> to vector<512x64xf32>
    %20 = arith.addf %17, %19 : vector<512x64xf32>
    %21 = arith.truncf %20 : vector<512x64xf32> to vector<512x64xbf16>
    %c0_16 = arith.constant 0 : index
    %c0_17 = arith.constant 0 : index
    %22 = vector.load %arg8[%c0_16, %c0_17] : memref<64x32xbf16, #tpu.memory_space<vmem>>, vector<64x32xbf16>
    %cst_18 = arith.constant dense<0.000000e+00> : vector<512x32xf32>
    %23 = tpu.matmul %21, %22, %cst_18 {dimension_numbers = #tpu.dot_dimension_numbers<[1], [0], [0], [1], [0, 0, 1, 1], [], []>} : vector<512x64xbf16>, vector<64x32xbf16>, vector<512x32xf32> -> vector<512x32xf32>
    %c0_19 = arith.constant 0 : index
    %c0_20 = arith.constant 0 : index
    %24 = vector.load %arg9[%c0_19, %c0_20] : memref<1x32xf32, #tpu.memory_space<vmem>>, vector<1x32xf32>
    %25 = vector.broadcast %24 : vector<1x32xf32> to vector<512x32xf32>
    %26 = arith.addf %23, %25 : vector<512x32xf32>
    %cst_21 = arith.constant 0.000000e+00 : f32
    %27 = vector.broadcast %cst_21 : f32 to vector<512x32xf32>
    %28 = arith.maximumf %26, %27 : vector<512x32xf32>
    %29 = arith.truncf %28 : vector<512x32xf32> to vector<512x32xbf16>
    %c0_22 = arith.constant 0 : index
    %c0_23 = arith.constant 0 : index
    %30 = vector.load %arg10[%c0_22, %c0_23] : memref<32x32xbf16, #tpu.memory_space<vmem>>, vector<32x32xbf16>
    %cst_24 = arith.constant dense<0.000000e+00> : vector<512x32xf32>
    %31 = tpu.matmul %29, %30, %cst_24 {dimension_numbers = #tpu.dot_dimension_numbers<[1], [0], [0], [1], [0, 0, 1, 1], [], []>} : vector<512x32xbf16>, vector<32x32xbf16>, vector<512x32xf32> -> vector<512x32xf32>
    %c0_25 = arith.constant 0 : index
    %c0_26 = arith.constant 0 : index
    %32 = vector.load %arg11[%c0_25, %c0_26] : memref<1x32xf32, #tpu.memory_space<vmem>>, vector<1x32xf32>
    %33 = vector.broadcast %32 : vector<1x32xf32> to vector<512x32xf32>
    %34 = arith.addf %31, %33 : vector<512x32xf32>
    %c0_27 = arith.constant 0 : index
    %c0_28 = arith.constant 0 : index
    %35 = vector.load %arg12[%c0_27, %c0_28] : memref<512x32xf32, #tpu.memory_space<vmem>>, vector<512x32xf32>
    tpu.vector_store %arg12[%c0_27, %c0_28], %34 {strides = array<i32>} : memref<512x32xf32, #tpu.memory_space<vmem>>, vector<512x32xf32>,
    return
  }
  func.func @transform_0(%arg0: i32) -> (i32, i32) {
    %c0_i32 = arith.constant 0 : i32
    %c0_i32_0 = arith.constant 0 : i32
    return %arg0, %c0_i32 : i32, i32
  }
  func.func @transform_1(%arg0: i32) -> (i32, i32) {
    %c0_i32 = arith.constant 0 : i32
    %c0_i32_0 = arith.constant 0 : i32
    %c0_i32_1 = arith.constant 0 : i32
    return %c0_i32, %c0_i32_0 : i32, i32
  }
  func.func @transform_2(%arg0: i32) -> (i32, i32) {
    %c0_i32 = arith.constant 0 : i32
    %c0_i32_0 = arith.constant 0 : i32
    %c0_i32_1 = arith.constant 0 : i32
    return %c0_i32, %c0_i32_0 : i32, i32
  }
  func.func @transform_3(%arg0: i32) -> (i32, i32) {
    %c0_i32 = arith.constant 0 : i32
    %c0_i32_0 = arith.constant 0 : i32
    %c0_i32_1 = arith.constant 0 : i32
    return %c0_i32, %c0_i32_0 : i32, i32
  }
  func.func @transform_4(%arg0: i32) -> (i32, i32) {
    %c0_i32 = arith.constant 0 : i32
    %c0_i32_0 = arith.constant 0 : i32
    %c0_i32_1 = arith.constant 0 : i32
    return %c0_i32, %c0_i32_0 : i32, i32
  }
  func.func @transform_5(%arg0: i32) -> (i32, i32) {
    %c0_i32 = arith.constant 0 : i32
    %c0_i32_0 = arith.constant 0 : i32
    %c0_i32_1 = arith.constant 0 : i32
    return %c0_i32, %c0_i32_0 : i32, i32
  }
  func.func @transform_6(%arg0: i32) -> (i32, i32) {
    %c0_i32 = arith.constant 0 : i32
    %c0_i32_0 = arith.constant 0 : i32
    %c0_i32_1 = arith.constant 0 : i32
    return %c0_i32, %c0_i32_0 : i32, i32
  }
  func.func @transform_7(%arg0: i32) -> (i32, i32) {
    %c0_i32 = arith.constant 0 : i32
    %c0_i32_0 = arith.constant 0 : i32
    %c0_i32_1 = arith.constant 0 : i32
    return %c0_i32, %c0_i32_0 : i32, i32
  }
  func.func @transform_8(%arg0: i32) -> (i32, i32) {
    %c0_i32 = arith.constant 0 : i32
    %c0_i32_0 = arith.constant 0 : i32
    %c0_i32_1 = arith.constant 0 : i32
    return %c0_i32, %c0_i32_0 : i32, i32
  }
  func.func @transform_9(%arg0: i32) -> (i32, i32) {
    %c0_i32 = arith.constant 0 : i32
    %c0_i32_0 = arith.constant 0 : i32
    %c0_i32_1 = arith.constant 0 : i32
    return %c0_i32, %c0_i32_0 : i32, i32
  }
  func.func @transform_10(%arg0: i32) -> (i32, i32) {
    %c0_i32 = arith.constant 0 : i32
    %c0_i32_0 = arith.constant 0 : i32
    %c0_i32_1 = arith.constant 0 : i32
    return %c0_i32, %c0_i32_0 : i32, i32
  }
  func.func @transform_11(%arg0: i32) -> (i32, i32) {
    %c0_i32 = arith.constant 0 : i32
    %c0_i32_0 = arith.constant 0 : i32
    return %arg0, %c0_i32 : i32, i32
  }
}

</mosaic_0001>

<llo_original>
// kernel: tpu_custom_call.1
$region0: #{tpu_custom_call.1}
  #allocation0 [shape = 'u32[]', space=smem, size = 0x4, offset = 0x4, fixed_abs, tag = 'smem constant byte address 0x4 - core index']
  #allocation1 [shape = 'u32[72,128]{1,0:T(1,128)}', space=vmem, size = 0x9000, scoped, tag = 'internal scratch']
  %s0 = inlined_call_operand.vmem [shape: f32[1024,32], index: 0, kind: input, shape index: {}]
  %s1 = inlined_call_operand.vmem [shape: bf16[32,64], index: 1, kind: input, shape index: {}]
  %s2 = inlined_call_operand.vmem [shape: f32[1,64], index: 2, kind: input, shape index: {}]
  %s3 = inlined_call_operand.vmem [shape: bf16[64,32], index: 3, kind: input, shape index: {}]
  %s4 = inlined_call_operand.vmem [shape: f32[1,32], index: 4, kind: input, shape index: {}]
  %s5 = inlined_call_operand.vmem [shape: bf16[32,64], index: 5, kind: input, shape index: {}]
  %s6 = inlined_call_operand.vmem [shape: f32[1,64], index: 6, kind: input, shape index: {}]
  %s7 = inlined_call_operand.vmem [shape: bf16[64,32], index: 7, kind: input, shape index: {}]
  %s8 = inlined_call_operand.vmem [shape: f32[1,32], index: 8, kind: input, shape index: {}]
  %s9 = inlined_call_operand.vmem [shape: bf16[32,32], index: 9, kind: input, shape index: {}]
  %s10 = inlined_call_operand.vmem [shape: f32[1,32], index: 10, kind: input, shape index: {}]
  %s11 = inlined_call_operand.vmem [shape: f32[1024,32], index: 11, kind: output, shape index: {}]
  %s12 = sld [smem:[#allocation0]]
  $region77: #{tpu_custom_call.1} parent=0
    _
  %s14 = ssub.s32 1, %s12
  %s15 = scalar_select 0, %s14, %s12
  loop: start=0, step=1, limit=4
  $region2: #{tpu_custom_call.1} parent=0 // loop_pre_header
    _
  $region3: #{tpu_custom_call.1} parent=0 // loop_header
    %s17 = sphi 0, %s21
    %p18 = scmp.ge.s32.totalorder %s17, 4
    %s27 = sphi 0, %s29
    %s30 = sphi 0, %s27
    %s31 = sphi 0, %s30
    %s47 = sphi 0, %s31
    %s51 = sphi 0, %s51
    %s53 = sphi 0, %s51
    %s54 = sphi 0, %s53
    %s68 = sphi 0, %s54
    %s72 = sphi 0, %s72
    %s74 = sphi 0, %s72
    %s75 = sphi 0, %s74
    %s89 = sphi 0, %s75
    %s93 = sphi 0, %s93
    %s95 = sphi 0, %s93
    %s96 = sphi 0, %s95
    %s110 = sphi 0, %s96
    %s114 = sphi 0, %s114
    %s116 = sphi 0, %s114
    %s117 = sphi 0, %s116
    %s131 = sphi 0, %s117
    %s135 = sphi 0, %s135
    %s137 = sphi 0, %s135
    %s138 = sphi 0, %s137
    %s152 = sphi 0, %s138
    %s156 = sphi 0, %s156
    %s158 = sphi 0, %s156
    %s159 = sphi 0, %s158
    %s173 = sphi 0, %s159
    %s177 = sphi 0, %s177
    %s179 = sphi 0, %s177
    %s180 = sphi 0, %s179
    %s194 = sphi 0, %s180
    %s198 = sphi 0, %s198
    %s200 = sphi 0, %s198
    %s201 = sphi 0, %s200
    %s215 = sphi 0, %s201
    %s219 = sphi 0, %s219
    %s221 = sphi 0, %s219
    %s222 = sphi 0, %s221
    %s236 = sphi 0, %s222
    %s240 = sphi 0, %s240
    %s242 = sphi 0, %s240
    %s243 = sphi 0, %s242
    %s257 = sphi 0, %s243
    %s263 = sphi 0, %s265
    %s266 = sphi 0, %s263
    %s267 = sphi 0, %s266
    %s283 = sphi 0, %s267
  $region4: #{tpu_custom_call.1} parent=0 // loop_header_branch
    %20 = sbr.rel (%p18) target = $region8
  $region5: #{tpu_custom_call.1} parent=0 // loop_body
    %s22 = ssub.s32 %s17, 1
    %s23 = ssub.s32 %s17, 2
    %s24 = sadd.s32 %s17, 1
    %s25 = ssub.s32 %s17, %s24
    %p26 = scmp.eq.s32.totalorder %s25, 0
    %s28 = sadd.s32 %s27, 1
    %s29 = scalar_select %p26, %s27, %s28
    %p32 = pneg %p26
    %p33 = scmp.eq.s32.totalorder %s17, 1
    %p34 = por %p32, %p33
    %p35 = scmp.ne.s32.totalorder %s27, %s30
    %p36 = scmp.eq.s32.totalorder %s17, 0
    %p37 = por %p35, %p36
    %p38 = scmp.ne.s32.totalorder %s27, %s30
    %p39 = scmp.eq.s32.totalorder %s22, 1
    %p40 = por %p38, %p39
    %p41 = scmp.ne.s32.totalorder %s30, %s31
    %p42 = scmp.eq.s32.totalorder %s22, 0
    %p43 = por %p41, %p42
    %p44 = scmp.ne.s32.totalorder %s30, %s31
    %p45 = scmp.eq.s32.totalorder %s23, 1
    %p46 = por %p44, %p45
    %p48 = scmp.ne.s32.totalorder %s31, %s47
    %p49 = scmp.eq.s32.totalorder %s23, 0
    %p50 = por %p48, %p49
    %s52 = sadd.s32 %s51, 1
    %p55 = scmp.eq.s32.totalorder %s17, 1
    %p56 = scmp.ne.s32.totalorder %s51, %s53
    %p57 = scmp.eq.s32.totalorder %s17, 0
    %p58 = por %p56, %p57
    %p59 = scmp.ne.s32.totalorder %s51, %s53
    %p60 = scmp.eq.s32.totalorder %s22, 1
    %p61 = por %p59, %p60
    %p62 = scmp.ne.s32.totalorder %s53, %s54
    %p63 = scmp.eq.s32.totalorder %s22, 0
    %p64 = por %p62, %p63
    %p65 = scmp.ne.s32.totalorder %s53, %s54
    %p66 = scmp.eq.s32.totalorder %s23, 1
    %p67 = por %p65, %p66
    %p69 = scmp.ne.s32.totalorder %s54, %s68
    %p70 = scmp.eq.s32.totalorder %s23, 0
    %p71 = por %p69, %p70
    %s73 = sadd.s32 %s72, 1
    %p76 = scmp.eq.s32.totalorder %s17, 1
    %p77 = scmp.ne.s32.totalorder %s72, %s74
    %p78 = scmp.eq.s32.totalorder %s17, 0
    %p79 = por %p77, %p78
    %p80 = scmp.ne.s32.totalorder %s72, %s74
    %p81 = scmp.eq.s32.totalorder %s22, 1
    %p82 = por %p80, %p81
    %p83 = scmp.ne.s32.totalorder %s74, %s75
    %p84 = scmp.eq.s32.totalorder %s22, 0
    %p85 = por %p83, %p84
    %p86 = scmp.ne.s32.totalorder %s74, %s75
    %p87 = scmp.eq.s32.totalorder %s23, 1
    %p88 = por %p86, %p87
    %p90 = scmp.ne.s32.totalorder %s75, %s89
    %p91 = scmp.eq.s32.totalorder %s23, 0
    %p92 = por %p90, %p91
    %s94 = sadd.s32 %s93, 1
    %p97 = scmp.eq.s32.totalorder %s17, 1
    %p98 = scmp.ne.s32.totalorder %s93, %s95
    %p99 = scmp.eq.s32.totalorder %s17, 0
    %p100 = por %p98, %p99
    %p101 = scmp.ne.s32.totalorder %s93, %s95
    %p102 = scmp.eq.s32.totalorder %s22, 1
    %p103 = por %p101, %p102
    %p104 = scmp.ne.s32.totalorder %s95, %s96
    %p105 = scmp.eq.s32.totalorder %s22, 0
    %p106 = por %p104, %p105
    %p107 = scmp.ne.s32.totalorder %s95, %s96
    %p108 = scmp.eq.s32.totalorder %s23, 1
    %p109 = por %p107, %p108
    %p111 = scmp.ne.s32.totalorder %s96, %s110
    %p112 = scmp.eq.s32.totalorder %s23, 0
    %p113 = por %p111, %p112
    %s115 = sadd.s32 %s114, 1
    %p118 = scmp.eq.s32.totalorder %s17, 1
    %p119 = scmp.ne.s32.totalorder %s114, %s116
    %p120 = scmp.eq.s32.totalorder %s17, 0
    %p121 = por %p119, %p120
    %p122 = scmp.ne.s32.totalorder %s114, %s116
    %p123 = scmp.eq.s32.totalorder %s22, 1
    %p124 = por %p122, %p123
    %p125 = scmp.ne.s32.totalorder %s116, %s117
    %p126 = scmp.eq.s32.totalorder %s22, 0
    %p127 = por %p125, %p126
    %p128 = scmp.ne.s32.totalorder %s116, %s117
    %p129 = scmp.eq.s32.totalorder %s23, 1
    %p130 = por %p128, %p129
    %p132 = scmp.ne.s32.totalorder %s117, %s131
    %p133 = scmp.eq.s32.totalorder %s23, 0
    %p134 = por %p132, %p133
    %s136 = sadd.s32 %s135, 1
    %p139 = scmp.eq.s32.totalorder %s17, 1
    %p140 = scmp.ne.s32.totalorder %s135, %s137
    %p141 = scmp.eq.s32.totalorder %s17, 0
    %p142 = por %p140, %p141
    %p143 = scmp.ne.s32.totalorder %s135, %s137
    %p144 = scmp.eq.s32.totalorder %s22, 1
    %p145 = por %p143, %p144
    %p146 = scmp.ne.s32.totalorder %s137, %s138
    %p147 = scmp.eq.s32.totalorder %s22, 0
    %p148 = por %p146, %p147
    %p149 = scmp.ne.s32.totalorder %s137, %s138
    %p150 = scmp.eq.s32.totalorder %s23, 1
    %p151 = por %p149, %p150
    %p153 = scmp.ne.s32.totalorder %s138, %s152
    %p154 = scmp.eq.s32.totalorder %s23, 0
    %p155 = por %p153, %p154
    %s157 = sadd.s32 %s156, 1
    %p160 = scmp.eq.s32.totalorder %s17, 1
    %p161 = scmp.ne.s32.totalorder %s156, %s158
    %p162 = scmp.eq.s32.totalorder %s17, 0
    %p163 = por %p161, %p162
    %p164 = scmp.ne.s32.totalorder %s156, %s158
    %p165 = scmp.eq.s32.totalorder %s22, 1
    %p166 = por %p164, %p165
    %p167 = scmp.ne.s32.totalorder %s158, %s159
    %p168 = scmp.eq.s32.totalorder %s22, 0
    %p169 = por %p167, %p168
    %p170 = scmp.ne.s32.totalorder %s158, %s159
    %p171 = scmp.eq.s32.totalorder %s23, 1
    %p172 = por %p170, %p171
    %p174 = scmp.ne.s32.totalorder %s159, %s173
    %p175 = scmp.eq.s32.totalorder %s23, 0
    %p176 = por %p174, %p175
    %s178 = sadd.s32 %s177, 1
    %p181 = scmp.eq.s32.totalorder %s17, 1
    %p182 = scmp.ne.s32.totalorder %s177, %s179
    %p183 = scmp.eq.s32.totalorder %s17, 0
    %p184 = por %p182, %p183
    %p185 = scmp.ne.s32.totalorder %s177, %s179
    %p186 = scmp.eq.s32.totalorder %s22, 1
    %p187 = por %p185, %p186
    %p188 = scmp.ne.s32.totalorder %s179, %s180
    %p189 = scmp.eq.s32.totalorder %s22, 0
    %p190 = por %p188, %p189
    %p191 = scmp.ne.s32.totalorder %s179, %s180
    %p192 = scmp.eq.s32.totalorder %s23, 1
    %p193 = por %p191, %p192
    %p195 = scmp.ne.s32.totalorder %s180, %s194
    %p196 = scmp.eq.s32.totalorder %s23, 0
    %p197 = por %p195, %p196
    %s199 = sadd.s32 %s198, 1
    %p202 = scmp.eq.s32.totalorder %s17, 1
    %p203 = scmp.ne.s32.totalorder %s198, %s200
    %p204 = scmp.eq.s32.totalorder %s17, 0
    %p205 = por %p203, %p204
    %p206 = scmp.ne.s32.totalorder %s198, %s200
    %p207 = scmp.eq.s32.totalorder %s22, 1
    %p208 = por %p206, %p207
    %p209 = scmp.ne.s32.totalorder %s200, %s201
    %p210 = scmp.eq.s32.totalorder %s22, 0
    %p211 = por %p209, %p210
    %p212 = scmp.ne.s32.totalorder %s200, %s201
    %p213 = scmp.eq.s32.totalorder %s23, 1
    %p214 = por %p212, %p213
    %p216 = scmp.ne.s32.totalorder %s201, %s215
    %p217 = scmp.eq.s32.totalorder %s23, 0
    %p218 = por %p216, %p217
    %s220 = sadd.s32 %s219, 1
    %p223 = scmp.eq.s32.totalorder %s17, 1
    %p224 = scmp.ne.s32.totalorder %s219, %s221
    %p225 = scmp.eq.s32.totalorder %s17, 0
    %p226 = por %p224, %p225
    %p227 = scmp.ne.s32.totalorder %s219, %s221
    %p228 = scmp.eq.s32.totalorder %s22, 1
    %p229 = por %p227, %p228
    %p230 = scmp.ne.s32.totalorder %s221, %s222
    %p231 = scmp.eq.s32.totalorder %s22, 0
    %p232 = por %p230, %p231
    %p233 = scmp.ne.s32.totalorder %s221, %s222
    %p234 = scmp.eq.s32.totalorder %s23, 1
    %p235 = por %p233, %p234
    %p237 = scmp.ne.s32.totalorder %s222, %s236
    %p238 = scmp.eq.s32.totalorder %s23, 0
    %p239 = por %p237, %p238
    %s241 = sadd.s32 %s240, 1
    %p244 = scmp.eq.s32.totalorder %s17, 1
    %p245 = scmp.ne.s32.totalorder %s240, %s242
    %p246 = scmp.eq.s32.totalorder %s17, 0
    %p247 = por %p245, %p246
    %p248 = scmp.ne.s32.totalorder %s240, %s242
    %p249 = scmp.eq.s32.totalorder %s22, 1
    %p250 = por %p248, %p249
    %p251 = scmp.ne.s32.totalorder %s242, %s243
    %p252 = scmp.eq.s32.totalorder %s22, 0
    %p253 = por %p251, %p252
    %p254 = scmp.ne.s32.totalorder %s242, %s243
    %p255 = scmp.eq.s32.totalorder %s23, 1
    %p256 = por %p254, %p255
    %p258 = scmp.ne.s32.totalorder %s243, %s257
    %p259 = scmp.eq.s32.totalorder %s23, 0
    %p260 = por %p258, %p259
    %s261 = ssub.s32 %s17, %s24
    %p262 = scmp.eq.s32.totalorder %s261, 0
    %s264 = sadd.s32 %s263, 1
    %s265 = scalar_select %p262, %s263, %s264
    %p268 = pneg %p262
    %p269 = scmp.eq.s32.totalorder %s17, 1
    %p270 = por %p268, %p269
    %p271 = scmp.ne.s32.totalorder %s263, %s266
    %p272 = scmp.eq.s32.totalorder %s17, 0
    %p273 = por %p271, %p272
    %p274 = scmp.ne.s32.totalorder %s263, %s266
    %p275 = scmp.eq.s32.totalorder %s22, 1
    %p276 = por %p274, %p275
    %p277 = scmp.ne.s32.totalorder %s266, %s267
    %p278 = scmp.eq.s32.totalorder %s22, 0
    %p279 = por %p277, %p278
    %p280 = scmp.ne.s32.totalorder %s266, %s267
    %p281 = scmp.eq.s32.totalorder %s23, 1
    %p282 = por %p280, %p281
    %p284 = scmp.ne.s32.totalorder %s267, %s283
    %p285 = scmp.eq.s32.totalorder %s23, 0
    %p286 = por %p284, %p285
    %p287 = scmp.le.s32.totalorder 1, %s17
    %p288 = scmp.lt.s32.totalorder %s17, 3
    %p289 = pnand %p287, %p288
    %p290 = pneg %p289
    // Predicated region
    $region9: #{tpu_custom_call.1} parent=5 // pred_check
      _
    $region10: #{tpu_custom_call.1} parent=5 // pred_check_branch
      %292 = sbr.rel (%p289) target = $region12
    $region11: #{tpu_custom_call.1} parent=5 // pred_region
      %s293 = ssub.s32 %s17, 1
      // Predicated region
      $region13: #{tpu_custom_call.1} parent=11 // pred_check
        %p294 = pneg %p64
      $region14: #{tpu_custom_call.1} parent=11 // pred_check_branch
        %296 = sbr.rel (%p294) target = $region16
      $region15: #{tpu_custom_call.1} parent=11 // pred_region
        _
      $region16: #{tpu_custom_call.1} parent=11 // pred_fallthru
        _
      // Predicated region
      $region17: #{tpu_custom_call.1} parent=11 // pred_check
        %p297 = pneg %p85
      $region18: #{tpu_custom_call.1} parent=11 // pred_check_branch
        %299 = sbr.rel (%p297) target = $region20
      $region19: #{tpu_custom_call.1} parent=11 // pred_region
        _
      $region20: #{tpu_custom_call.1} parent=11 // pred_fallthru
        _
      // Predicated region
      $region21: #{tpu_custom_call.1} parent=11 // pred_check
        %p300 = pneg %p106
      $region22: #{tpu_custom_call.1} parent=11 // pred_check_branch
        %302 = sbr.rel (%p300) target = $region24
      $region23: #{tpu_custom_call.1} parent=11 // pred_region
        _
      $region24: #{tpu_custom_call.1} parent=11 // pred_fallthru
        _
      // Predicated region
      $region25: #{tpu_custom_call.1} parent=11 // pred_check
        %p303 = pneg %p127
      $region26: #{tpu_custom_call.1} parent=11 // pred_check_branch
        %305 = sbr.rel (%p303) target = $region28
      $region27: #{tpu_custom_call.1} parent=11 // pred_region
        _
      $region28: #{tpu_custom_call.1} parent=11 // pred_fallthru
        _
      // Predicated region
      $region29: #{tpu_custom_call.1} parent=11 // pred_check
        %p306 = pneg %p148
      $region30: #{tpu_custom_call.1} parent=11 // pred_check_branch
        %308 = sbr.rel (%p306) target = $region32
      $region31: #{tpu_custom_call.1} parent=11 // pred_region
        _
      $region32: #{tpu_custom_call.1} parent=11 // pred_fallthru
        _
      // Predicated region
      $region33: #{tpu_custom_call.1} parent=11 // pred_check
        %p309 = pneg %p169
      $region34: #{tpu_custom_call.1} parent=11 // pred_check_branch
        %311 = sbr.rel (%p309) target = $region36
      $region35: #{tpu_custom_call.1} parent=11 // pred_region
        _
      $region36: #{tpu_custom_call.1} parent=11 // pred_fallthru
        _
      // Predicated region
      $region37: #{tpu_custom_call.1} parent=11 // pred_check
        %p312 = pneg %p190
      $region38: #{tpu_custom_call.1} parent=11 // pred_check_branch
        %314 = sbr.rel (%p312) target = $region40
      $region39: #{tpu_custom_call.1} parent=11 // pred_region
        _
      $region40: #{tpu_custom_call.1} parent=11 // pred_fallthru
        _
      // Predicated region
      $region41: #{tpu_custom_call.1} parent=11 // pred_check
        %p315 = pneg %p211
      $region42: #{tpu_custom_call.1} parent=11 // pred_check_branch
        %317 = sbr.rel (%p315) target = $region44
      $region43: #{tpu_custom_call.1} parent=11 // pred_region
        _
      $region44: #{tpu_custom_call.1} parent=11 // pred_fallthru
        _
      // Predicated region
      $region45: #{tpu_custom_call.1} parent=11 // pred_check
        %p318 = pneg %p232
      $region46: #{tpu_custom_call.1} parent=11 // pred_check_branch
        %320 = sbr.rel (%p318) target = $region48
      $region47: #{tpu_custom_call.1} parent=11 // pred_region
        _
      $region48: #{tpu_custom_call.1} parent=11 // pred_fallthru
        _
      // Predicated region
      $region49: #{tpu_custom_call.1} parent=11 // pred_check
        %p321 = pneg %p253
      $region50: #{tpu_custom_call.1} parent=11 // pred_check_branch
        %323 = sbr.rel (%p321) target = $region52
      $region51: #{tpu_custom_call.1} parent=11 // pred_region
        _
      $region52: #{tpu_custom_call.1} parent=11 // pred_fallthru
        _
    $region12: #{tpu_custom_call.1} parent=5 // pred_fallthru
      _
    %p324 = scmp.lt.s32.totalorder %s17, 2
    // Predicated region
    $region53: #{tpu_custom_call.1} parent=5 // pred_check
      %p325 = pneg %p324
    $region54: #{tpu_custom_call.1} parent=5 // pred_check_branch
      %327 = sbr.rel (%p325) target = $region56
    $region55: #{tpu_custom_call.1} parent=5 // pred_region
      // Predicated region
      $region57: #{tpu_custom_call.1} parent=55 // pred_check
        %p328 = pneg %p37
      $region58: #{tpu_custom_call.1} parent=55 // pred_check_branch
        %330 = sbr.rel (%p328) target = $region60
      $region59: #{tpu_custom_call.1} parent=55 // pred_region
        %s331 = smul.u32 64, %s17
        %p332 = scmp.lt.s32.totalorder %s331, 127
        %s333 = scalar_select %p332, %s331, 127
        %s334 = smul.addr %s333, 8
        %s335 = scalar_lea.vmem %s0, %s334
        %s336 = smul.u32 64, %s17
      $region60: #{tpu_custom_call.1} parent=55 // pred_fallthru
        _
    $region56: #{tpu_custom_call.1} parent=5 // pred_fallthru
      _
    %p337 = scmp.le.s32.totalorder 1, %s17
    %p338 = scmp.lt.s32.totalorder %s17, 3
    %p339 = pnand %p337, %p338
    %p340 = pneg %p339
    // Predicated region
    $region61: #{tpu_custom_call.1} parent=5 // pred_check
      _
    $region62: #{tpu_custom_call.1} parent=5 // pred_check_branch
      %342 = sbr.rel (%p339) target = $region64
    $region63: #{tpu_custom_call.1} parent=5 // pred_region
      %s343 = ssub.s32 %s17, 1
      %s344 = smul.u32 64, %s22
      %p345 = scmp.lt.s32.totalorder %s344, 127
      %s346 = scalar_select %p345, %s344, 127
      %s347 = smul.addr %s346, 8
      %s348 = scalar_lea.vmem %s0, %s347
      %p349 = pneg %p43
      %p350 = pneg %p40
      %p351 = pneg %p64
      %p352 = pneg %p61
      %p353 = pneg %p85
      %p354 = pneg %p82
      %p355 = pneg %p106
      %p356 = pneg %p103
      %p357 = pneg %p127
      %p358 = pneg %p124
      %p359 = pneg %p148
      %p360 = pneg %p145
      %p361 = pneg %p169
      %p362 = pneg %p166
      %p363 = pneg %p190
      %p364 = pneg %p187
      %p365 = pneg %p211
      %p366 = pneg %p208
      %p367 = pneg %p232
      %p368 = pneg %p229
      %p369 = pneg %p253
      %p370 = pneg %p250
      %p371 = pneg %p279
      %p372 = pneg %p276
      %s373 = smul.u32 64, %s22
      %p374 = scmp.lt.s32.totalorder %s373, 127
      %s375 = scalar_select %p374, %s373, 127
      %s376 = smul.addr %s375, 8
      %s377 = scalar_lea.vmem %s11, %s376
      %s378 = smul.u32 64, %s22
      %p379 = scmp.lt.s32.totalorder %s378, 127
      %s380 = scalar_select %p379, %s378, 127
      %s381 = smul.addr %s380, 8
      %s382 = scalar_lea.vmem %s0, %s381
      %s383 = smul.u32 64, %s22
      %s384 = smul.u32 64, %s22
      %p385 = scmp.lt.s32.totalorder %s384, 127
      %s386 = scalar_select %p385, %s384, 127
      %s387 = smul.addr %s386, 8
      %s388 = scalar_lea.vmem %s11, %s387
      %s389 = smul.u32 64, %s22
      %v391 = vld [vmem:[%s382] sm:$0xff]
      %v392 = vld [vmem:[%s382 + $0x8] sm:$0xff]
      %v393 = vld [vmem:[%s382 + $0x10] sm:$0xff]
      %v394 = vld [vmem:[%s382 + $0x18] sm:$0xff]
      %v395 = vld [vmem:[%s382 + $0x20] sm:$0xff]
      %v396 = vld [vmem:[%s382 + $0x28] sm:$0xff]
      %v397 = vld [vmem:[%s382 + $0x30] sm:$0xff]
      %v398 = vld [vmem:[%s382 + $0x38] sm:$0xff]
      %v399 = vld [vmem:[%s382 + $0x40] sm:$0xff]
      %v400 = vld [vmem:[%s382 + $0x48] sm:$0xff]
      %v401 = vld [vmem:[%s382 + $0x50] sm:$0xff]
      %v402 = vld [vmem:[%s382 + $0x58] sm:$0xff]
      %v403 = vld [vmem:[%s382 + $0x60] sm:$0xff]
      %v404 = vld [vmem:[%s382 + $0x68] sm:$0xff]
      %v405 = vld [vmem:[%s382 + $0x70] sm:$0xff]
      %v406 = vld [vmem:[%s382 + $0x78] sm:$0xff]
      %v407 = vld [vmem:[%s382 + $0x80] sm:$0xff]
      %v408 = vld [vmem:[%s382 + $0x88] sm:$0xff]
      %v409 = vld [vmem:[%s382 + $0x90] sm:$0xff]
      %v410 = vld [vmem:[%s382 + $0x98] sm:$0xff]
      %v411 = vld [vmem:[%s382 + $0xa0] sm:$0xff]
      %v412 = vld [vmem:[%s382 + $0xa8] sm:$0xff]
      %v413 = vld [vmem:[%s382 + $0xb0] sm:$0xff]
      %v414 = vld [vmem:[%s382 + $0xb8] sm:$0xff]
      %v415 = vld [vmem:[%s382 + $0xc0] sm:$0xff]
      %v416 = vld [vmem:[%s382 + $0xc8] sm:$0xff]
      %v417 = vld [vmem:[%s382 + $0xd0] sm:$0xff]
      %v418 = vld [vmem:[%s382 + $0xd8] sm:$0xff]
      %v419 = vld [vmem:[%s382 + $0xe0] sm:$0xff]
      %v420 = vld [vmem:[%s382 + $0xe8] sm:$0xff]
      %v421 = vld [vmem:[%s382 + $0xf0] sm:$0xff]
      %v422 = vld [vmem:[%s382 + $0xf8] sm:$0xff]
      %v423 = vld [vmem:[%s382 + $0x100] sm:$0xff]
      %v424 = vld [vmem:[%s382 + $0x108] sm:$0xff]
      %v425 = vld [vmem:[%s382 + $0x110] sm:$0xff]
      %v426 = vld [vmem:[%s382 + $0x118] sm:$0xff]
      %v427 = vld [vmem:[%s382 + $0x120] sm:$0xff]
      %v428 = vld [vmem:[%s382 + $0x128] sm:$0xff]
      %v429 = vld [vmem:[%s382 + $0x130] sm:$0xff]
      %v430 = vld [vmem:[%s382 + $0x138] sm:$0xff]
      %v431 = vld [vmem:[%s382 + $0x140] sm:$0xff]
      %v432 = vld [vmem:[%s382 + $0x148] sm:$0xff]
      %v433 = vld [vmem:[%s382 + $0x150] sm:$0xff]
      %v434 = vld [vmem:[%s382 + $0x158] sm:$0xff]
      %v435 = vld [vmem:[%s382 + $0x160] sm:$0xff]
      %v436 = vld [vmem:[%s382 + $0x168] sm:$0xff]
      %v437 = vld [vmem:[%s382 + $0x170] sm:$0xff]
      %v438 = vld [vmem:[%s382 + $0x178] sm:$0xff]
      %v439 = vld [vmem:[%s382 + $0x180] sm:$0xff]
      %v440 = vld [vmem:[%s382 + $0x188] sm:$0xff]
      %v441 = vld [vmem:[%s382 + $0x190] sm:$0xff]
      %v442 = vld [vmem:[%s382 + $0x198] sm:$0xff]
      %v443 = vld [vmem:[%s382 + $0x1a0] sm:$0xff]
      %v444 = vld [vmem:[%s382 + $0x1a8] sm:$0xff]
      %v445 = vld [vmem:[%s382 + $0x1b0] sm:$0xff]
      %v446 = vld [vmem:[%s382 + $0x1b8] sm:$0xff]
      %v447 = vld [vmem:[%s382 + $0x1c0] sm:$0xff]
      %v448 = vld [vmem:[%s382 + $0x1c8] sm:$0xff]
      %v449 = vld [vmem:[%s382 + $0x1d0] sm:$0xff]
      %v450 = vld [vmem:[%s382 + $0x1d8] sm:$0xff]
      %v451 = vld [vmem:[%s382 + $0x1e0] sm:$0xff]
      %v452 = vld [vmem:[%s382 + $0x1e8] sm:$0xff]
      %v453 = vld [vmem:[%s382 + $0x1f0] sm:$0xff]
      %v454 = vld [vmem:[%s382 + $0x1f8] sm:$0xff]
      %v455 = vpack.c.bf16 %v392, %v391
      %v456 = vpack.c.bf16 %v394, %v393
      %v457 = vpack.c.bf16 %v396, %v395
      %v458 = vpack.c.bf16 %v398, %v397
      %v459 = vpack.c.bf16 %v400, %v399
      %v460 = vpack.c.bf16 %v402, %v401
      %v461 = vpack.c.bf16 %v404, %v403
      %v462 = vpack.c.bf16 %v406, %v405
      %v463 = vpack.c.bf16 %v408, %v407
      %v464 = vpack.c.bf16 %v410, %v409
      %v465 = vpack.c.bf16 %v412, %v411
      %v466 = vpack.c.bf16 %v414, %v413
      %v467 = vpack.c.bf16 %v416, %v415
      %v468 = vpack.c.bf16 %v418, %v417
      %v469 = vpack.c.bf16 %v420, %v419
      %v470 = vpack.c.bf16 %v422, %v421
      %v471 = vpack.c.bf16 %v424, %v423
      %v472 = vpack.c.bf16 %v426, %v425
      %v473 = vpack.c.bf16 %v428, %v427
      %v474 = vpack.c.bf16 %v430, %v429
      %v475 = vpack.c.bf16 %v432, %v431
      %v476 = vpack.c.bf16 %v434, %v433
      %v477 = vpack.c.bf16 %v436, %v435
      %v478 = vpack.c.bf16 %v438, %v437
      %v479 = vpack.c.bf16 %v440, %v439
      %v480 = vpack.c.bf16 %v442, %v441
      %v481 = vpack.c.bf16 %v444, %v443
      %v482 = vpack.c.bf16 %v446, %v445
      %v483 = vpack.c.bf16 %v448, %v447
      %v484 = vpack.c.bf16 %v450, %v449
      %v485 = vpack.c.bf16 %v452, %v451
      %v486 = vpack.c.bf16 %v454, %v453
      %v487 = vld [vmem:[%s1] sm:$0xf]
      %v488 = vld [vmem:[%s1 + $0x4] sm:$0xf]
      %v489 = vld [vmem:[%s1 + $0x8] sm:$0xf]
      %v490 = vld [vmem:[%s1 + $0xc] sm:$0xf]
      %v491 = vld [vmem:[%s2] sm:$0x1]
      %v493 = vperm.slane %v491, 0
      %v499 = vunpack.c.l.b16 %v487
      %v500 = vunpack.c.l.b16 %v488
      %v501 = vunpack.c.l.b16 %v489
      %v502 = vunpack.c.l.b16 %v490
      %v503 = vpack.c.b16 %v500, %v499
      %v504 = vpack.c.b16 %v502, %v501
      %vm507 = vcmask 261120
      %v509 = vsel %vm507, %v455, 0
      %v512 = vsel %vm507, %v456, 0
      %v515 = vsel %vm507, %v457, 0
      %v518 = vsel %vm507, %v458, 0
      %v521 = vsel %vm507, %v459, 0
      %v524 = vsel %vm507, %v460, 0
      %v527 = vsel %vm507, %v461, 0
      %v530 = vsel %vm507, %v462, 0
      %v533 = vsel %vm507, %v463, 0
      %v536 = vsel %vm507, %v464, 0
      %v539 = vsel %vm507, %v465, 0
      %v542 = vsel %vm507, %v466, 0
      %v545 = vsel %vm507, %v467, 0
      %v548 = vsel %vm507, %v468, 0
      %v551 = vsel %vm507, %v469, 0
      %v554 = vsel %vm507, %v470, 0
      %v557 = vsel %vm507, %v471, 0
      %v560 = vsel %vm507, %v472, 0
      %v563 = vsel %vm507, %v473, 0
      %v566 = vsel %vm507, %v474, 0
      %v569 = vsel %vm507, %v475, 0
      %v572 = vsel %vm507, %v476, 0
      %v575 = vsel %vm507, %v477, 0
      %v578 = vsel %vm507, %v478, 0
      %v581 = vsel %vm507, %v479, 0
      %v584 = vsel %vm507, %v480, 0
      %v587 = vsel %vm507, %v481, 0
      %v590 = vsel %vm507, %v482, 0
      %v593 = vsel %vm507, %v483, 0
      %v596 = vsel %vm507, %v484, 0
      %v599 = vsel %vm507, %v485, 0
      %v602 = vsel %vm507, %v486, 0
      %604 = vmatpush.bf16.msra.mxu0 0
      %605 = vmatpush.bf16.msra.mxu0 0
      %606 = vmatpush.bf16.msra.mxu0 0
      %607 = vmatpush.bf16.msra.mxu0 0
      %608 = vmatpush.bf16.msra.mxu0 0
      %609 = vmatpush.bf16.msra.mxu0 0
      %610 = vmatpush.bf16.msra.mxu0 %v504
      %611 = vmatpush.bf16.msra.mxu0 %v503
      %612 = vmatmul.bf16.gmra.mxu0 %v509
      %v613 = vpop.f32.mrf.mxu0
      %v614 = vadd.f32 %v493, %v613
      %v615 = vpop.f32.mrf.mxu0
      %v616 = vadd.f32 %v493, %v615
      %617 = vmatmul.bf16.gmra.mxu0 %v512
      %v618 = vpop.f32.mrf.mxu0
      %v619 = vadd.f32 %v493, %v618
      %v620 = vpop.f32.mrf.mxu0
      %v621 = vadd.f32 %v493, %v620
      %622 = vmatmul.bf16.gmra.mxu0 %v515
      %v623 = vpop.f32.mrf.mxu0
      %v624 = vadd.f32 %v493, %v623
      %v625 = vpop.f32.mrf.mxu0
      %v626 = vadd.f32 %v493, %v625
      %627 = vmatmul.bf16.gmra.mxu0 %v518
      %v628 = vpop.f32.mrf.mxu0
      %v629 = vadd.f32 %v493, %v628
      %v630 = vpop.f32.mrf.mxu0
      %v631 = vadd.f32 %v493, %v630
      %632 = vmatmul.bf16.gmra.mxu0 %v521
      %v633 = vpop.f32.mrf.mxu0
      %v634 = vadd.f32 %v493, %v633
      %v635 = vpop.f32.mrf.mxu0
      %v636 = vadd.f32 %v493, %v635
      %637 = vmatmul.bf16.gmra.mxu0 %v524
      %v638 = vpop.f32.mrf.mxu0
      %v639 = vadd.f32 %v493, %v638
      %v640 = vpop.f32.mrf.mxu0
      %v641 = vadd.f32 %v493, %v640
      %642 = vmatmul.bf16.gmra.mxu0 %v527
      %v643 = vpop.f32.mrf.mxu0
      %v644 = vadd.f32 %v493, %v643
      %v645 = vpop.f32.mrf.mxu0
      %v646 = vadd.f32 %v493, %v645
      %647 = vmatmul.bf16.gmra.mxu0 %v530
      %v648 = vpop.f32.mrf.mxu0
      %v649 = vadd.f32 %v493, %v648
      %v650 = vpop.f32.mrf.mxu0
      %v651 = vadd.f32 %v493, %v650
      %652 = vmatmul.bf16.gmra.mxu0 %v533
      %v653 = vpop.f32.mrf.mxu0
      %v654 = vadd.f32 %v493, %v653
      %v655 = vpop.f32.mrf.mxu0
      %v656 = vadd.f32 %v493, %v655
      %657 = vmatmul.bf16.gmra.mxu0 %v536
      %v658 = vpop.f32.mrf.mxu0
      %v659 = vadd.f32 %v493, %v658
      %v660 = vpop.f32.mrf.mxu0
      %v661 = vadd.f32 %v493, %v660
      %662 = vmatmul.bf16.gmra.mxu0 %v539
      %v663 = vpop.f32.mrf.mxu0
      %v664 = vadd.f32 %v493, %v663
      %v665 = vpop.f32.mrf.mxu0
      %v666 = vadd.f32 %v493, %v665
      %667 = vmatmul.bf16.gmra.mxu0 %v542
      %v668 = vpop.f32.mrf.mxu0
      %v669 = vadd.f32 %v493, %v668
      %v670 = vpop.f32.mrf.mxu0
      %v671 = vadd.f32 %v493, %v670
      %672 = vmatmul.bf16.gmra.mxu0 %v545
      %v673 = vpop.f32.mrf.mxu0
      %v674 = vadd.f32 %v493, %v673
      %v675 = vpop.f32.mrf.mxu0
      %v676 = vadd.f32 %v493, %v675
      %677 = vmatmul.bf16.gmra.mxu0 %v548
      %v678 = vpop.f32.mrf.mxu0
      %v679 = vadd.f32 %v493, %v678
      %v680 = vpop.f32.mrf.mxu0
      %v681 = vadd.f32 %v493, %v680
      %682 = vmatmul.bf16.gmra.mxu0 %v551
      %v683 = vpop.f32.mrf.mxu0
      %v684 = vadd.f32 %v493, %v683
      %v685 = vpop.f32.mrf.mxu0
      %v686 = vadd.f32 %v493, %v685
      %687 = vmatmul.bf16.gmra.mxu0 %v554
      %v688 = vpop.f32.mrf.mxu0
      %v689 = vadd.f32 %v493, %v688
      %v690 = vpop.f32.mrf.mxu0
      %v691 = vadd.f32 %v493, %v690
      %692 = vmatmul.bf16.gmra.mxu0 %v557
      %v693 = vpop.f32.mrf.mxu0
      %v694 = vadd.f32 %v493, %v693
      %v695 = vpop.f32.mrf.mxu0
      %v696 = vadd.f32 %v493, %v695
      %697 = vmatmul.bf16.gmra.mxu0 %v560
      %v698 = vpop.f32.mrf.mxu0
      %v699 = vadd.f32 %v493, %v698
      %v700 = vpop.f32.mrf.mxu0
      %v701 = vadd.f32 %v493, %v700
      %702 = vmatmul.bf16.gmra.mxu0 %v563
      %v703 = vpop.f32.mrf.mxu0
      %v704 = vadd.f32 %v493, %v703
      %v705 = vpop.f32.mrf.mxu0
      %v706 = vadd.f32 %v493, %v705
      %707 = vmatmul.bf16.gmra.mxu0 %v566
      %v708 = vpop.f32.mrf.mxu0
      %v709 = vadd.f32 %v493, %v708
      %v710 = vpop.f32.mrf.mxu0
      %v711 = vadd.f32 %v493, %v710
      %712 = vmatmul.bf16.gmra.mxu0 %v569
      %v713 = vpop.f32.mrf.mxu0
      %v714 = vadd.f32 %v493, %v713
      %v715 = vpop.f32.mrf.mxu0
      %v716 = vadd.f32 %v493, %v715
      %717 = vmatmul.bf16.gmra.mxu0 %v572
      %v718 = vpop.f32.mrf.mxu0
      %v719 = vadd.f32 %v493, %v718
      %v720 = vpop.f32.mrf.mxu0
      %v721 = vadd.f32 %v493, %v720
      %722 = vmatmul.bf16.gmra.mxu0 %v575
      %v723 = vpop.f32.mrf.mxu0
      %v724 = vadd.f32 %v493, %v723
      %v725 = vpop.f32.mrf.mxu0
      %v726 = vadd.f32 %v493, %v725
      %727 = vmatmul.bf16.gmra.mxu0 %v578
      %v728 = vpop.f32.mrf.mxu0
      %v729 = vadd.f32 %v493, %v728
      %v730 = vpop.f32.mrf.mxu0
      %v731 = vadd.f32 %v493, %v730
      %732 = vmatmul.bf16.gmra.mxu0 %v581
      %v733 = vpop.f32.mrf.mxu0
      %v734 = vadd.f32 %v493, %v733
      %v735 = vpop.f32.mrf.mxu0
      %v736 = vadd.f32 %v493, %v735
      %737 = vmatmul.bf16.gmra.mxu0 %v584
      %v738 = vpop.f32.mrf.mxu0
      %v739 = vadd.f32 %v493, %v738
      %v740 = vpop.f32.mrf.mxu0
      %v741 = vadd.f32 %v493, %v740
      %742 = vmatmul.bf16.gmra.mxu0 %v587
      %v743 = vpop.f32.mrf.mxu0
      %v744 = vadd.f32 %v493, %v743
      %v745 = vpop.f32.mrf.mxu0
      %v746 = vadd.f32 %v493, %v745
      %747 = vmatmul.bf16.gmra.mxu0 %v590
      %v748 = vpop.f32.mrf.mxu0
      %v749 = vadd.f32 %v493, %v748
      %v750 = vpop.f32.mrf.mxu0
      %v751 = vadd.f32 %v493, %v750
      %752 = vmatmul.bf16.gmra.mxu0 %v593
      %v753 = vpop.f32.mrf.mxu0
      %v754 = vadd.f32 %v493, %v753
      %v755 = vpop.f32.mrf.mxu0
      %v756 = vadd.f32 %v493, %v755
      %757 = vmatmul.bf16.gmra.mxu0 %v596
      %v758 = vpop.f32.mrf.mxu0
      %v759 = vadd.f32 %v493, %v758
      %v760 = vpop.f32.mrf.mxu0
      %v761 = vadd.f32 %v493, %v760
      %762 = vmatmul.bf16.gmra.mxu0 %v599
      %v763 = vpop.f32.mrf.mxu0
      %v764 = vadd.f32 %v493, %v763
      %v765 = vpop.f32.mrf.mxu0
      %v766 = vadd.f32 %v493, %v765
      %767 = vmatmul.bf16.gmra.mxu0 %v602
      %v768 = vpop.f32.mrf.mxu0
      %v769 = vadd.f32 %v493, %v768
      %v770 = vpop.f32.mrf.mxu0
      %v771 = vadd.f32 %v493, %v770
      %772 = vdwg.mxu0
      %v773 = vpack.c.bf16 %v616, %v614
      %v774 = vpack.c.bf16 %v621, %v619
      %v775 = vpack.c.bf16 %v626, %v624
      %v776 = vpack.c.bf16 %v631, %v629
      %v777 = vpack.c.bf16 %v636, %v634
      %v778 = vpack.c.bf16 %v641, %v639
      %v779 = vpack.c.bf16 %v646, %v644
      %v780 = vpack.c.bf16 %v651, %v649
      %v781 = vpack.c.bf16 %v656, %v654
      %v782 = vpack.c.bf16 %v661, %v659
      %v783 = vpack.c.bf16 %v666, %v664
      %v784 = vpack.c.bf16 %v671, %v669
      %v785 = vpack.c.bf16 %v676, %v674
      %v786 = vpack.c.bf16 %v681, %v679
      %v787 = vpack.c.bf16 %v686, %v684
      %v788 = vpack.c.bf16 %v691, %v689
      %v789 = vpack.c.bf16 %v696, %v694
      %v790 = vpack.c.bf16 %v701, %v699
      %v791 = vpack.c.bf16 %v706, %v704
      %v792 = vpack.c.bf16 %v711, %v709
      %v793 = vpack.c.bf16 %v716, %v714
      %v794 = vpack.c.bf16 %v721, %v719
      %v795 = vpack.c.bf16 %v726, %v724
      %v796 = vpack.c.bf16 %v731, %v729
      %v797 = vpack.c.bf16 %v736, %v734
      %v798 = vpack.c.bf16 %v741, %v739
      %v799 = vpack.c.bf16 %v746, %v744
      %v800 = vpack.c.bf16 %v751, %v749
      %v801 = vpack.c.bf16 %v756, %v754
      %v802 = vpack.c.bf16 %v761, %v759
      %v803 = vpack.c.bf16 %v766, %v764
      %v804 = vpack.c.bf16 %v771, %v769
      %v805 = vld [vmem:[%s3] sm:$0xf]
      %v806 = vld [vmem:[%s3 + $0x4] sm:$0xf]
      %v807 = vld [vmem:[%s3 + $0x8] sm:$0xf]
      %v808 = vld [vmem:[%s3 + $0xc] sm:$0xf]
      %v809 = vld [vmem:[%s3 + $0x10] sm:$0xf]
      %v810 = vld [vmem:[%s3 + $0x14] sm:$0xf]
      %v811 = vld [vmem:[%s3 + $0x18] sm:$0xf]
      %v812 = vld [vmem:[%s3 + $0x1c] sm:$0xf]
      %v813 = vld [vmem:[%s4] sm:$0x1]
      %v815 = vperm.slane %v813, 0
      %v825 = vunpack.c.l.b16 %v805
      %v826 = vunpack.c.l.b16 %v806
      %v827 = vunpack.c.l.b16 %v807
      %v828 = vunpack.c.l.b16 %v808
      %v829 = vunpack.c.l.b16 %v809
      %v830 = vunpack.c.l.b16 %v810
      %v831 = vunpack.c.l.b16 %v811
      %v832 = vunpack.c.l.b16 %v812
      %v833 = vpack.c.b16 %v826, %v825
      %v834 = vpack.c.b16 %v828, %v827
      %v835 = vpack.c.b16 %v830, %v829
      %v836 = vpack.c.b16 %v832, %v831
      %vm841 = vcmask 523264
      %v843 = vsel %vm841, %v773, 0
      %v846 = vsel %vm841, %v774, 0
      %v849 = vsel %vm841, %v775, 0
      %v852 = vsel %vm841, %v776, 0
      %v855 = vsel %vm841, %v777, 0
      %v858 = vsel %vm841, %v778, 0
      %v861 = vsel %vm841, %v779, 0
      %v864 = vsel %vm841, %v780, 0
      %v867 = vsel %vm841, %v781, 0
      %v870 = vsel %vm841, %v782, 0
      %v873 = vsel %vm841, %v783, 0
      %v876 = vsel %vm841, %v784, 0
      %v879 = vsel %vm841, %v785, 0
      %v882 = vsel %vm841, %v786, 0
      %v885 = vsel %vm841, %v787, 0
      %v888 = vsel %vm841, %v788, 0
      %v891 = vsel %vm841, %v789, 0
      %v894 = vsel %vm841, %v790, 0
      %v897 = vsel %vm841, %v791, 0
      %v900 = vsel %vm841, %v792, 0
      %v903 = vsel %vm841, %v793, 0
      %v906 = vsel %vm841, %v794, 0
      %v909 = vsel %vm841, %v795, 0
      %v912 = vsel %vm841, %v796, 0
      %v915 = vsel %vm841, %v797, 0
      %v918 = vsel %vm841, %v798, 0
      %v921 = vsel %vm841, %v799, 0
      %v924 = vsel %vm841, %v800, 0
      %v927 = vsel %vm841, %v801, 0
      %v930 = vsel %vm841, %v802, 0
      %v933 = vsel %vm841, %v803, 0
      %v936 = vsel %vm841, %v804, 0
      %938 = vmatpush.bf16.msra.mxu0 0
      %939 = vmatpush.bf16.msra.mxu0 0
      %940 = vmatpush.bf16.msra.mxu0 0
      %941 = vmatpush.bf16.msra.mxu0 0
      %942 = vmatpush.bf16.msra.mxu0 %v836
      %943 = vmatpush.bf16.msra.mxu0 %v835
      %944 = vmatpush.bf16.msra.mxu0 %v834
      %945 = vmatpush.bf16.msra.mxu0 %v833
      %946 = vmatmul.bf16.gmra.mxu0 %v843
      %v947 = vpop.f32.mrf.mxu0
      %v948 = vadd.f32 %v815, %v947
      %v949 = vpop.f32.mrf.mxu0
      %v950 = vadd.f32 %v815, %v949
      %951 = vmatmul.bf16.gmra.mxu0 %v846
      %v952 = vpop.f32.mrf.mxu0
      %v953 = vadd.f32 %v815, %v952
      %v954 = vpop.f32.mrf.mxu0
      %v955 = vadd.f32 %v815, %v954
      %956 = vmatmul.bf16.gmra.mxu0 %v849
      %v957 = vpop.f32.mrf.mxu0
      %v958 = vadd.f32 %v815, %v957
      %v959 = vpop.f32.mrf.mxu0
      %v960 = vadd.f32 %v815, %v959
      %961 = vmatmul.bf16.gmra.mxu0 %v852
      %v962 = vpop.f32.mrf.mxu0
      %v963 = vadd.f32 %v815, %v962
      %v964 = vpop.f32.mrf.mxu0
      %v965 = vadd.f32 %v815, %v964
      %966 = vmatmul.bf16.gmra.mxu0 %v855
      %v967 = vpop.f32.mrf.mxu0
      %v968 = vadd.f32 %v815, %v967
      %v969 = vpop.f32.mrf.mxu0
      %v970 = vadd.f32 %v815, %v969
      %971 = vmatmul.bf16.gmra.mxu0 %v858
      %v972 = vpop.f32.mrf.mxu0
      %v973 = vadd.f32 %v815, %v972
      %v974 = vpop.f32.mrf.mxu0
      %v975 = vadd.f32 %v815, %v974
      %976 = vmatmul.bf16.gmra.mxu0 %v861
      %v977 = vpop.f32.mrf.mxu0
      %v978 = vadd.f32 %v815, %v977
      %v979 = vpop.f32.mrf.mxu0
      %v980 = vadd.f32 %v815, %v979
      %981 = vmatmul.bf16.gmra.mxu0 %v864
      %v982 = vpop.f32.mrf.mxu0
      %v983 = vadd.f32 %v815, %v982
      %v984 = vpop.f32.mrf.mxu0
      %v985 = vadd.f32 %v815, %v984
      %986 = vmatmul.bf16.gmra.mxu0 %v867
      %v987 = vpop.f32.mrf.mxu0
      %v988 = vadd.f32 %v815, %v987
      %v989 = vpop.f32.mrf.mxu0
      %v990 = vadd.f32 %v815, %v989
      %991 = vmatmul.bf16.gmra.mxu0 %v870
      %v992 = vpop.f32.mrf.mxu0
      %v993 = vadd.f32 %v815, %v992
      %v994 = vpop.f32.mrf.mxu0
      %v995 = vadd.f32 %v815, %v994
      %996 = vmatmul.bf16.gmra.mxu0 %v873
      %v997 = vpop.f32.mrf.mxu0
      %v998 = vadd.f32 %v815, %v997
      %v999 = vpop.f32.mrf.mxu0
      %v1000 = vadd.f32 %v815, %v999
      %1001 = vmatmul.bf16.gmra.mxu0 %v876
      %v1002 = vpop.f32.mrf.mxu0
      %v1003 = vadd.f32 %v815, %v1002
      %v1004 = vpop.f32.mrf.mxu0
      %v1005 = vadd.f32 %v815, %v1004
      %1006 = vmatmul.bf16.gmra.mxu0 %v879
      %v1007 = vpop.f32.mrf.mxu0
      %v1008 = vadd.f32 %v815, %v1007
      %v1009 = vpop.f32.mrf.mxu0
      %v1010 = vadd.f32 %v815, %v1009
      %1011 = vmatmul.bf16.gmra.mxu0 %v882
      %v1012 = vpop.f32.mrf.mxu0
      %v1013 = vadd.f32 %v815, %v1012
      %v1014 = vpop.f32.mrf.mxu0
      %v1015 = vadd.f32 %v815, %v1014
      %1016 = vmatmul.bf16.gmra.mxu0 %v885
      %v1017 = vpop.f32.mrf.mxu0
      %v1018 = vadd.f32 %v815, %v1017
      %v1019 = vpop.f32.mrf.mxu0
      %v1020 = vadd.f32 %v815, %v1019
      %1021 = vmatmul.bf16.gmra.mxu0 %v888
      %v1022 = vpop.f32.mrf.mxu0
      %v1023 = vadd.f32 %v815, %v1022
      %v1024 = vpop.f32.mrf.mxu0
      %v1025 = vadd.f32 %v815, %v1024
      %1026 = vmatmul.bf16.gmra.mxu0 %v891
      %v1027 = vpop.f32.mrf.mxu0
      %v1028 = vadd.f32 %v815, %v1027
      %v1029 = vpop.f32.mrf.mxu0
      %v1030 = vadd.f32 %v815, %v1029
      %1031 = vmatmul.bf16.gmra.mxu0 %v894
      %v1032 = vpop.f32.mrf.mxu0
      %v1033 = vadd.f32 %v815, %v1032
      %v1034 = vpop.f32.mrf.mxu0
      %v1035 = vadd.f32 %v815, %v1034
      %1036 = vmatmul.bf16.gmra.mxu0 %v897
      %v1037 = vpop.f32.mrf.mxu0
      %v1038 = vadd.f32 %v815, %v1037
      %v1039 = vpop.f32.mrf.mxu0
      %v1040 = vadd.f32 %v815, %v1039
      %1041 = vmatmul.bf16.gmra.mxu0 %v900
      %v1042 = vpop.f32.mrf.mxu0
      %v1043 = vadd.f32 %v815, %v1042
      %v1044 = vpop.f32.mrf.mxu0
      %v1045 = vadd.f32 %v815, %v1044
      %1046 = vmatmul.bf16.gmra.mxu0 %v903
      %v1047 = vpop.f32.mrf.mxu0
      %v1048 = vadd.f32 %v815, %v1047
      %v1049 = vpop.f32.mrf.mxu0
      %v1050 = vadd.f32 %v815, %v1049
      %1051 = vmatmul.bf16.gmra.mxu0 %v906
      %v1052 = vpop.f32.mrf.mxu0
      %v1053 = vadd.f32 %v815, %v1052
      %v1054 = vpop.f32.mrf.mxu0
      %v1055 = vadd.f32 %v815, %v1054
      %1056 = vmatmul.bf16.gmra.mxu0 %v909
      %v1057 = vpop.f32.mrf.mxu0
      %v1058 = vadd.f32 %v815, %v1057
      %v1059 = vpop.f32.mrf.mxu0
      %v1060 = vadd.f32 %v815, %v1059
      %1061 = vmatmul.bf16.gmra.mxu0 %v912
      %v1062 = vpop.f32.mrf.mxu0
      %v1063 = vadd.f32 %v815, %v1062
      %v1064 = vpop.f32.mrf.mxu0
      %v1065 = vadd.f32 %v815, %v1064
      %1066 = vmatmul.bf16.gmra.mxu0 %v915
      %v1067 = vpop.f32.mrf.mxu0
      %v1068 = vadd.f32 %v815, %v1067
      %v1069 = vpop.f32.mrf.mxu0
      %v1070 = vadd.f32 %v815, %v1069
      %1071 = vmatmul.bf16.gmra.mxu0 %v918
      %v1072 = vpop.f32.mrf.mxu0
      %v1073 = vadd.f32 %v815, %v1072
      %v1074 = vpop.f32.mrf.mxu0
      %v1075 = vadd.f32 %v815, %v1074
      %1076 = vmatmul.bf16.gmra.mxu0 %v921
      %v1077 = vpop.f32.mrf.mxu0
      %v1078 = vadd.f32 %v815, %v1077
      %v1079 = vpop.f32.mrf.mxu0
      %v1080 = vadd.f32 %v815, %v1079
      %1081 = vmatmul.bf16.gmra.mxu0 %v924
      %v1082 = vpop.f32.mrf.mxu0
      %v1083 = vadd.f32 %v815, %v1082
      %v1084 = vpop.f32.mrf.mxu0
      %v1085 = vadd.f32 %v815, %v1084
      %1086 = vmatmul.bf16.gmra.mxu0 %v927
      %v1087 = vpop.f32.mrf.mxu0
      %v1088 = vadd.f32 %v815, %v1087
      %v1089 = vpop.f32.mrf.mxu0
      %v1090 = vadd.f32 %v815, %v1089
      %1091 = vmatmul.bf16.gmra.mxu0 %v930
      %v1092 = vpop.f32.mrf.mxu0
      %v1093 = vadd.f32 %v815, %v1092
      %v1094 = vpop.f32.mrf.mxu0
      %v1095 = vadd.f32 %v815, %v1094
      %1096 = vmatmul.bf16.gmra.mxu0 %v933
      %v1097 = vpop.f32.mrf.mxu0
      %v1098 = vadd.f32 %v815, %v1097
      %v1099 = vpop.f32.mrf.mxu0
      %v1100 = vadd.f32 %v815, %v1099
      %1101 = vmatmul.bf16.gmra.mxu0 %v936
      %v1102 = vpop.f32.mrf.mxu0
      %v1103 = vadd.f32 %v815, %v1102
      %v1104 = vpop.f32.mrf.mxu0
      %v1105 = vadd.f32 %v815, %v1104
      %1106 = vdwg.mxu0
      %v1107 = vmax.f32 %v948, 0.0
      %v1108 = vmax.f32 %v950, 0.0
      %v1109 = vmax.f32 %v953, 0.0
      %v1110 = vmax.f32 %v955, 0.0
      %v1111 = vmax.f32 %v958, 0.0
      %v1112 = vmax.f32 %v960, 0.0
      %v1113 = vmax.f32 %v963, 0.0
      %v1114 = vmax.f32 %v965, 0.0
      %v1115 = vmax.f32 %v968, 0.0
      %v1116 = vmax.f32 %v970, 0.0
      %v1117 = vmax.f32 %v973, 0.0
      %v1118 = vmax.f32 %v975, 0.0
      %v1119 = vmax.f32 %v978, 0.0
      %v1120 = vmax.f32 %v980, 0.0
      %v1121 = vmax.f32 %v983, 0.0
      %v1122 = vmax.f32 %v985, 0.0
      %v1123 = vmax.f32 %v988, 0.0
      %v1124 = vmax.f32 %v990, 0.0
      %v1125 = vmax.f32 %v993, 0.0
      %v1126 = vmax.f32 %v995, 0.0
      %v1127 = vmax.f32 %v998, 0.0
      %v1128 = vmax.f32 %v1000, 0.0
      %v1129 = vmax.f32 %v1003, 0.0
      %v1130 = vmax.f32 %v1005, 0.0
      %v1131 = vmax.f32 %v1008, 0.0
      %v1132 = vmax.f32 %v1010, 0.0
      %v1133 = vmax.f32 %v1013, 0.0
      %v1134 = vmax.f32 %v1015, 0.0
      %v1135 = vmax.f32 %v1018, 0.0
      %v1136 = vmax.f32 %v1020, 0.0
      %v1137 = vmax.f32 %v1023, 0.0
      %v1138 = vmax.f32 %v1025, 0.0
      %v1139 = vmax.f32 %v1028, 0.0
      %v1140 = vmax.f32 %v1030, 0.0
      %v1141 = vmax.f32 %v1033, 0.0
      %v1142 = vmax.f32 %v1035, 0.0
      %v1143 = vmax.f32 %v1038, 0.0
      %v1144 = vmax.f32 %v1040, 0.0
      %v1145 = vmax.f32 %v1043, 0.0
      %v1146 = vmax.f32 %v1045, 0.0
      %v1147 = vmax.f32 %v1048, 0.0
      %v1148 = vmax.f32 %v1050, 0.0
      %v1149 = vmax.f32 %v1053, 0.0
      %v1150 = vmax.f32 %v1055, 0.0
      %v1151 = vmax.f32 %v1058, 0.0
      %v1152 = vmax.f32 %v1060, 0.0
      %v1153 = vmax.f32 %v1063, 0.0
      %v1154 = vmax.f32 %v1065, 0.0
      %v1155 = vmax.f32 %v1068, 0.0
      %v1156 = vmax.f32 %v1070, 0.0
      %v1157 = vmax.f32 %v1073, 0.0
      %v1158 = vmax.f32 %v1075, 0.0
      %v1159 = vmax.f32 %v1078, 0.0
      %v1160 = vmax.f32 %v1080, 0.0
      %v1161 = vmax.f32 %v1083, 0.0
      %v1162 = vmax.f32 %v1085, 0.0
      %v1163 = vmax.f32 %v1088, 0.0
      %v1164 = vmax.f32 %v1090, 0.0
      %v1165 = vmax.f32 %v1093, 0.0
      %v1166 = vmax.f32 %v1095, 0.0
      %v1167 = vmax.f32 %v1098, 0.0
      %v1168 = vmax.f32 %v1100, 0.0
      %v1169 = vmax.f32 %v1103, 0.0
      %v1170 = vmax.f32 %v1105, 0.0
      %v1171 = vpack.c.bf16 %v1108, %v1107
      %v1172 = vpack.c.bf16 %v1110, %v1109
      %v1173 = vpack.c.bf16 %v1112, %v1111
      %v1174 = vpack.c.bf16 %v1114, %v1113
      %v1175 = vpack.c.bf16 %v1116, %v1115
      %v1176 = vpack.c.bf16 %v1118, %v1117
      %v1177 = vpack.c.bf16 %v1120, %v1119
      %v1178 = vpack.c.bf16 %v1122, %v1121
      %v1179 = vpack.c.bf16 %v1124, %v1123
      %v1180 = vpack.c.bf16 %v1126, %v1125
      %v1181 = vpack.c.bf16 %v1128, %v1127
      %v1182 = vpack.c.bf16 %v1130, %v1129
      %v1183 = vpack.c.bf16 %v1132, %v1131
      %v1184 = vpack.c.bf16 %v1134, %v1133
      %v1185 = vpack.c.bf16 %v1136, %v1135
      %v1186 = vpack.c.bf16 %v1138, %v1137
      %v1187 = vpack.c.bf16 %v1140, %v1139
      %v1188 = vpack.c.bf16 %v1142, %v1141
      %v1189 = vpack.c.bf16 %v1144, %v1143
      %v1190 = vpack.c.bf16 %v1146, %v1145
      %v1191 = vpack.c.bf16 %v1148, %v1147
      %v1192 = vpack.c.bf16 %v1150, %v1149
      %v1193 = vpack.c.bf16 %v1152, %v1151
      %v1194 = vpack.c.bf16 %v1154, %v1153
      %v1195 = vpack.c.bf16 %v1156, %v1155
      %v1196 = vpack.c.bf16 %v1158, %v1157
      %v1197 = vpack.c.bf16 %v1160, %v1159
      %v1198 = vpack.c.bf16 %v1162, %v1161
      %v1199 = vpack.c.bf16 %v1164, %v1163
      %v1200 = vpack.c.bf16 %v1166, %v1165
      %v1201 = vpack.c.bf16 %v1168, %v1167
      %v1202 = vpack.c.bf16 %v1170, %v1169
      %v1203 = vld [vmem:[%s5] sm:$0xf]
      %v1204 = vld [vmem:[%s5 + $0x4] sm:$0xf]
      %v1205 = vld [vmem:[%s5 + $0x8] sm:$0xf]
      %v1206 = vld [vmem:[%s5 + $0xc] sm:$0xf]
      %v1207 = vld [vmem:[%s6] sm:$0x1]
      %v1209 = vperm.slane %v1207, 0
      %v1215 = vunpack.c.l.b16 %v1203
      %v1216 = vunpack.c.l.b16 %v1204
      %v1217 = vunpack.c.l.b16 %v1205
      %v1218 = vunpack.c.l.b16 %v1206
      %v1219 = vpack.c.b16 %v1216, %v1215
      %v1220 = vpack.c.b16 %v1218, %v1217
      %v1224 = vsel %vm507, %v1171, 0
      %v1227 = vsel %vm507, %v1172, 0
      %v1230 = vsel %vm507, %v1173, 0
      %v1233 = vsel %vm507, %v1174, 0
      %v1236 = vsel %vm507, %v1175, 0
      %v1239 = vsel %vm507, %v1176, 0
      %v1242 = vsel %vm507, %v1177, 0
      %v1245 = vsel %vm507, %v1178, 0
      %v1248 = vsel %vm507, %v1179, 0
      %v1251 = vsel %vm507, %v1180, 0
      %v1254 = vsel %vm507, %v1181, 0
      %v1257 = vsel %vm507, %v1182, 0
      %v1260 = vsel %vm507, %v1183, 0
      %v1263 = vsel %vm507, %v1184, 0
      %v1266 = vsel %vm507, %v1185, 0
      %v1269 = vsel %vm507, %v1186, 0
      %v1272 = vsel %vm507, %v1187, 0
      %v1275 = vsel %vm507, %v1188, 0
      %v1278 = vsel %vm507, %v1189, 0
      %v1281 = vsel %vm507, %v1190, 0
      %v1284 = vsel %vm507, %v1191, 0
      %v1287 = vsel %vm507, %v1192, 0
      %v1290 = vsel %vm507, %v1193, 0
      %v1293 = vsel %vm507, %v1194, 0
      %v1296 = vsel %vm507, %v1195, 0
      %v1299 = vsel %vm507, %v1196, 0
      %v1302 = vsel %vm507, %v1197, 0
      %v1305 = vsel %vm507, %v1198, 0
      %v1308 = vsel %vm507, %v1199, 0
      %v1311 = vsel %vm507, %v1200, 0
      %v1314 = vsel %vm507, %v1201, 0
      %v1317 = vsel %vm507, %v1202, 0
      %1319 = vmatpush.bf16.msra.mxu0 0
      %1320 = vmatpush.bf16.msra.mxu0 0
      %1321 = vmatpush.bf16.msra.mxu0 0
      %1322 = vmatpush.bf16.msra.mxu0 0
      %1323 = vmatpush.bf16.msra.mxu0 0
      %1324 = vmatpush.bf16.msra.mxu0 0
      %1325 = vmatpush.bf16.msra.mxu0 %v1220
      %1326 = vmatpush.bf16.msra.mxu0 %v1219
      %1327 = vmatmul.bf16.gmra.mxu0 %v1224
      %v1328 = vpop.f32.mrf.mxu0
      %v1329 = vadd.f32 %v1209, %v1328
      %v1330 = vpop.f32.mrf.mxu0
      %v1331 = vadd.f32 %v1209, %v1330
      %1332 = vmatmul.bf16.gmra.mxu0 %v1227
      %v1333 = vpop.f32.mrf.mxu0
      %v1334 = vadd.f32 %v1209, %v1333
      %v1335 = vpop.f32.mrf.mxu0
      %v1336 = vadd.f32 %v1209, %v1335
      %1337 = vmatmul.bf16.gmra.mxu0 %v1230
      %v1338 = vpop.f32.mrf.mxu0
      %v1339 = vadd.f32 %v1209, %v1338
      %v1340 = vpop.f32.mrf.mxu0
      %v1341 = vadd.f32 %v1209, %v1340
      %1342 = vmatmul.bf16.gmra.mxu0 %v1233
      %v1343 = vpop.f32.mrf.mxu0
      %v1344 = vadd.f32 %v1209, %v1343
      %v1345 = vpop.f32.mrf.mxu0
      %v1346 = vadd.f32 %v1209, %v1345
      %1347 = vmatmul.bf16.gmra.mxu0 %v1236
      %v1348 = vpop.f32.mrf.mxu0
      %v1349 = vadd.f32 %v1209, %v1348
      %v1350 = vpop.f32.mrf.mxu0
      %v1351 = vadd.f32 %v1209, %v1350
      %1352 = vmatmul.bf16.gmra.mxu0 %v1239
      %v1353 = vpop.f32.mrf.mxu0
      %v1354 = vadd.f32 %v1209, %v1353
      %v1355 = vpop.f32.mrf.mxu0
      %v1356 = vadd.f32 %v1209, %v1355
      %1357 = vmatmul.bf16.gmra.mxu0 %v1242
      %v1358 = vpop.f32.mrf.mxu0
      %v1359 = vadd.f32 %v1209, %v1358
      %v1360 = vpop.f32.mrf.mxu0
      %v1361 = vadd.f32 %v1209, %v1360
      %1362 = vmatmul.bf16.gmra.mxu0 %v1245
      %v1363 = vpop.f32.mrf.mxu0
      %v1364 = vadd.f32 %v1209, %v1363
      %v1365 = vpop.f32.mrf.mxu0
      %v1366 = vadd.f32 %v1209, %v1365
      %1367 = vmatmul.bf16.gmra.mxu0 %v1248
      %v1368 = vpop.f32.mrf.mxu0
      %v1369 = vadd.f32 %v1209, %v1368
      %v1370 = vpop.f32.mrf.mxu0
      %v1371 = vadd.f32 %v1209, %v1370
      %1372 = vmatmul.bf16.gmra.mxu0 %v1251
      %v1373 = vpop.f32.mrf.mxu0
      %v1374 = vadd.f32 %v1209, %v1373
      %v1375 = vpop.f32.mrf.mxu0
      %v1376 = vadd.f32 %v1209, %v1375
      %1377 = vmatmul.bf16.gmra.mxu0 %v1254
      %v1378 = vpop.f32.mrf.mxu0
      %v1379 = vadd.f32 %v1209, %v1378
      %v1380 = vpop.f32.mrf.mxu0
      %v1381 = vadd.f32 %v1209, %v1380
      %1382 = vmatmul.bf16.gmra.mxu0 %v1257
      %v1383 = vpop.f32.mrf.mxu0
      %v1384 = vadd.f32 %v1209, %v1383
      %v1385 = vpop.f32.mrf.mxu0
      %v1386 = vadd.f32 %v1209, %v1385
      %1387 = vmatmul.bf16.gmra.mxu0 %v1260
      %v1388 = vpop.f32.mrf.mxu0
      %v1389 = vadd.f32 %v1209, %v1388
      %v1390 = vpop.f32.mrf.mxu0
      %v1391 = vadd.f32 %v1209, %v1390
      %1392 = vmatmul.bf16.gmra.mxu0 %v1263
      %v1393 = vpop.f32.mrf.mxu0
      %v1394 = vadd.f32 %v1209, %v1393
      %v1395 = vpop.f32.mrf.mxu0
      %v1396 = vadd.f32 %v1209, %v1395
      %1397 = vmatmul.bf16.gmra.mxu0 %v1266
      %v1398 = vpop.f32.mrf.mxu0
      %v1399 = vadd.f32 %v1209, %v1398
      %v1400 = vpop.f32.mrf.mxu0
      %v1401 = vadd.f32 %v1209, %v1400
      %1402 = vmatmul.bf16.gmra.mxu0 %v1269
      %v1403 = vpop.f32.mrf.mxu0
      %v1404 = vadd.f32 %v1209, %v1403
      %v1405 = vpop.f32.mrf.mxu0
      %v1406 = vadd.f32 %v1209, %v1405
      %1407 = vmatmul.bf16.gmra.mxu0 %v1272
      %v1408 = vpop.f32.mrf.mxu0
      %v1409 = vadd.f32 %v1209, %v1408
      %v1410 = vpop.f32.mrf.mxu0
      %v1411 = vadd.f32 %v1209, %v1410
      %1412 = vmatmul.bf16.gmra.mxu0 %v1275
      %v1413 = vpop.f32.mrf.mxu0
      %v1414 = vadd.f32 %v1209, %v1413
      %v1415 = vpop.f32.mrf.mxu0
      %v1416 = vadd.f32 %v1209, %v1415
      %1417 = vmatmul.bf16.gmra.mxu0 %v1278
      %v1418 = vpop.f32.mrf.mxu0
      %v1419 = vadd.f32 %v1209, %v1418
      %v1420 = vpop.f32.mrf.mxu0
      %v1421 = vadd.f32 %v1209, %v1420
      %1422 = vmatmul.bf16.gmra.mxu0 %v1281
      %v1423 = vpop.f32.mrf.mxu0
      %v1424 = vadd.f32 %v1209, %v1423
      %v1425 = vpop.f32.mrf.mxu0
      %v1426 = vadd.f32 %v1209, %v1425
      %1427 = vmatmul.bf16.gmra.mxu0 %v1284
      %v1428 = vpop.f32.mrf.mxu0
      %v1429 = vadd.f32 %v1209, %v1428
      %v1430 = vpop.f32.mrf.mxu0
      %v1431 = vadd.f32 %v1209, %v1430
      %1432 = vmatmul.bf16.gmra.mxu0 %v1287
      %v1433 = vpop.f32.mrf.mxu0
      %v1434 = vadd.f32 %v1209, %v1433
      %v1435 = vpop.f32.mrf.mxu0
      %v1436 = vadd.f32 %v1209, %v1435
      %1437 = vmatmul.bf16.gmra.mxu0 %v1290
      %v1438 = vpop.f32.mrf.mxu0
      %v1439 = vadd.f32 %v1209, %v1438
      %v1440 = vpop.f32.mrf.mxu0
      %v1441 = vadd.f32 %v1209, %v1440
      %1442 = vmatmul.bf16.gmra.mxu0 %v1293
      %v1443 = vpop.f32.mrf.mxu0
      %v1444 = vadd.f32 %v1209, %v1443
      %v1445 = vpop.f32.mrf.mxu0
      %v1446 = vadd.f32 %v1209, %v1445
      %1447 = vmatmul.bf16.gmra.mxu0 %v1296
      %v1448 = vpop.f32.mrf.mxu0
      %v1449 = vadd.f32 %v1209, %v1448
      %v1450 = vpop.f32.mrf.mxu0
      %v1451 = vadd.f32 %v1209, %v1450
      %1452 = vmatmul.bf16.gmra.mxu0 %v1299
      %v1453 = vpop.f32.mrf.mxu0
      %v1454 = vadd.f32 %v1209, %v1453
      %v1455 = vpop.f32.mrf.mxu0
      %v1456 = vadd.f32 %v1209, %v1455
      %1457 = vmatmul.bf16.gmra.mxu0 %v1302
      %v1458 = vpop.f32.mrf.mxu0
      %v1459 = vadd.f32 %v1209, %v1458
      %v1460 = vpop.f32.mrf.mxu0
      %v1461 = vadd.f32 %v1209, %v1460
      %1462 = vmatmul.bf16.gmra.mxu0 %v1305
      %v1463 = vpop.f32.mrf.mxu0
      %v1464 = vadd.f32 %v1209, %v1463
      %v1465 = vpop.f32.mrf.mxu0
      %v1466 = vadd.f32 %v1209, %v1465
      %1467 = vmatmul.bf16.gmra.mxu0 %v1308
      %v1468 = vpop.f32.mrf.mxu0
      %v1469 = vadd.f32 %v1209, %v1468
      %v1470 = vpop.f32.mrf.mxu0
      %v1471 = vadd.f32 %v1209, %v1470
      %1472 = vmatmul.bf16.gmra.mxu0 %v1311
      %v1473 = vpop.f32.mrf.mxu0
      %v1474 = vadd.f32 %v1209, %v1473
      %v1475 = vpop.f32.mrf.mxu0
      %v1476 = vadd.f32 %v1209, %v1475
      %1477 = vmatmul.bf16.gmra.mxu0 %v1314
      %v1478 = vpop.f32.mrf.mxu0
      %v1479 = vadd.f32 %v1209, %v1478
      %v1480 = vpop.f32.mrf.mxu0
      %v1481 = vadd.f32 %v1209, %v1480
      %1482 = vmatmul.bf16.gmra.mxu0 %v1317
      %v1483 = vpop.f32.mrf.mxu0
      %v1484 = vadd.f32 %v1209, %v1483
      %v1485 = vpop.f32.mrf.mxu0
      %v1486 = vadd.f32 %v1209, %v1485
      %1487 = vdwg.mxu0
      %v1488 = vpack.c.bf16 %v1331, %v1329
      %v1489 = vpack.c.bf16 %v1336, %v1334
      %v1490 = vpack.c.bf16 %v1341, %v1339
      %v1491 = vpack.c.bf16 %v1346, %v1344
      %v1492 = vpack.c.bf16 %v1351, %v1349
      %v1493 = vpack.c.bf16 %v1356, %v1354
      %v1494 = vpack.c.bf16 %v1361, %v1359
      %v1495 = vpack.c.bf16 %v1366, %v1364
      %v1496 = vpack.c.bf16 %v1371, %v1369
      %v1497 = vpack.c.bf16 %v1376, %v1374
      %v1498 = vpack.c.bf16 %v1381, %v1379
      %v1499 = vpack.c.bf16 %v1386, %v1384
      %v1500 = vpack.c.bf16 %v1391, %v1389
      %v1501 = vpack.c.bf16 %v1396, %v1394
      %v1502 = vpack.c.bf16 %v1401, %v1399
      %v1503 = vpack.c.bf16 %v1406, %v1404
      %v1504 = vpack.c.bf16 %v1411, %v1409
      %v1505 = vpack.c.bf16 %v1416, %v1414
      %v1506 = vpack.c.bf16 %v1421, %v1419
      %v1507 = vpack.c.bf16 %v1426, %v1424
      %v1508 = vpack.c.bf16 %v1431, %v1429
      %v1509 = vpack.c.bf16 %v1436, %v1434
      %v1510 = vpack.c.bf16 %v1441, %v1439
      %v1511 = vpack.c.bf16 %v1446, %v1444
      %v1512 = vpack.c.bf16 %v1451, %v1449
      %v1513 = vpack.c.bf16 %v1456, %v1454
      %v1514 = vpack.c.bf16 %v1461, %v1459
      %v1515 = vpack.c.bf16 %v1466, %v1464
      %v1516 = vpack.c.bf16 %v1471, %v1469
      %v1517 = vpack.c.bf16 %v1476, %v1474
      %v1518 = vpack.c.bf16 %v1481, %v1479
      %v1519 = vpack.c.bf16 %v1486, %v1484
      %v1520 = vld [vmem:[%s7] sm:$0xf]
      %v1521 = vld [vmem:[%s7 + $0x4] sm:$0xf]
      %v1522 = vld [vmem:[%s7 + $0x8] sm:$0xf]
      %v1523 = vld [vmem:[%s7 + $0xc] sm:$0xf]
      %v1524 = vld [vmem:[%s7 + $0x10] sm:$0xf]
      %v1525 = vld [vmem:[%s7 + $0x14] sm:$0xf]
      %v1526 = vld [vmem:[%s7 + $0x18] sm:$0xf]
      %v1527 = vld [vmem:[%s7 + $0x1c] sm:$0xf]
      %v1528 = vld [vmem:[%s8] sm:$0x1]
      %v1530 = vperm.slane %v1528, 0
      %v1540 = vunpack.c.l.b16 %v1520
      %v1541 = vunpack.c.l.b16 %v1521
      %v1542 = vunpack.c.l.b16 %v1522
      %v1543 = vunpack.c.l.b16 %v1523
      %v1544 = vunpack.c.l.b16 %v1524
      %v1545 = vunpack.c.l.b16 %v1525
      %v1546 = vunpack.c.l.b16 %v1526
      %v1547 = vunpack.c.l.b16 %v1527
      %v1548 = vpack.c.b16 %v1541, %v1540
      %v1549 = vpack.c.b16 %v1543, %v1542
      %v1550 = vpack.c.b16 %v1545, %v1544
      %v1551 = vpack.c.b16 %v1547, %v1546
      %v1557 = vsel %vm841, %v1488, 0
      %v1560 = vsel %vm841, %v1489, 0
      %v1563 = vsel %vm841, %v1490, 0
      %v1566 = vsel %vm841, %v1491, 0
      %v1569 = vsel %vm841, %v1492, 0
      %v1572 = vsel %vm841, %v1493, 0
      %v1575 = vsel %vm841, %v1494, 0
      %v1578 = vsel %vm841, %v1495, 0
      %v1581 = vsel %vm841, %v1496, 0
      %v1584 = vsel %vm841, %v1497, 0
      %v1587 = vsel %vm841, %v1498, 0
      %v1590 = vsel %vm841, %v1499, 0
      %v1593 = vsel %vm841, %v1500, 0
      %v1596 = vsel %vm841, %v1501, 0
      %v1599 = vsel %vm841, %v1502, 0
      %v1602 = vsel %vm841, %v1503, 0
      %v1605 = vsel %vm841, %v1504, 0
      %v1608 = vsel %vm841, %v1505, 0
      %v1611 = vsel %vm841, %v1506, 0
      %v1614 = vsel %vm841, %v1507, 0
      %v1617 = vsel %vm841, %v1508, 0
      %v1620 = vsel %vm841, %v1509, 0
      %v1623 = vsel %vm841, %v1510, 0
      %v1626 = vsel %vm841, %v1511, 0
      %v1629 = vsel %vm841, %v1512, 0
      %v1632 = vsel %vm841, %v1513, 0
      %v1635 = vsel %vm841, %v1514, 0
      %v1638 = vsel %vm841, %v1515, 0
      %v1641 = vsel %vm841, %v1516, 0
      %v1644 = vsel %vm841, %v1517, 0
      %v1647 = vsel %vm841, %v1518, 0
      %v1650 = vsel %vm841, %v1519, 0
      %1652 = vmatpush.bf16.msra.mxu0 0
      %1653 = vmatpush.bf16.msra.mxu0 0
      %1654 = vmatpush.bf16.msra.mxu0 0
      %1655 = vmatpush.bf16.msra.mxu0 0
      %1656 = vmatpush.bf16.msra.mxu0 %v1551
      %1657 = vmatpush.bf16.msra.mxu0 %v1550
      %1658 = vmatpush.bf16.msra.mxu0 %v1549
      %1659 = vmatpush.bf16.msra.mxu0 %v1548
      %1660 = vmatmul.bf16.gmra.mxu0 %v1557
      %v1661 = vpop.f32.mrf.mxu0
      %v1662 = vadd.f32 %v1530, %v1661
      %v1663 = vpop.f32.mrf.mxu0
      %v1664 = vadd.f32 %v1530, %v1663
      %1665 = vmatmul.bf16.gmra.mxu0 %v1560
      %v1666 = vpop.f32.mrf.mxu0
      %v1667 = vadd.f32 %v1530, %v1666
      %v1668 = vpop.f32.mrf.mxu0
      %v1669 = vadd.f32 %v1530, %v1668
      %1670 = vmatmul.bf16.gmra.mxu0 %v1563
      %v1671 = vpop.f32.mrf.mxu0
      %v1672 = vadd.f32 %v1530, %v1671
      %v1673 = vpop.f32.mrf.mxu0
      %v1674 = vadd.f32 %v1530, %v1673
      %1675 = vmatmul.bf16.gmra.mxu0 %v1566
      %v1676 = vpop.f32.mrf.mxu0
      %v1677 = vadd.f32 %v1530, %v1676
      %v1678 = vpop.f32.mrf.mxu0
      %v1679 = vadd.f32 %v1530, %v1678
      %1680 = vmatmul.bf16.gmra.mxu0 %v1569
      %v1681 = vpop.f32.mrf.mxu0
      %v1682 = vadd.f32 %v1530, %v1681
      %v1683 = vpop.f32.mrf.mxu0
      %v1684 = vadd.f32 %v1530, %v1683
      %1685 = vmatmul.bf16.gmra.mxu0 %v1572
      %v1686 = vpop.f32.mrf.mxu0
      %v1687 = vadd.f32 %v1530, %v1686
      %v1688 = vpop.f32.mrf.mxu0
      %v1689 = vadd.f32 %v1530, %v1688
      %1690 = vmatmul.bf16.gmra.mxu0 %v1575
      %v1691 = vpop.f32.mrf.mxu0
      %v1692 = vadd.f32 %v1530, %v1691
      %v1693 = vpop.f32.mrf.mxu0
      %v1694 = vadd.f32 %v1530, %v1693
      %1695 = vmatmul.bf16.gmra.mxu0 %v1578
      %v1696 = vpop.f32.mrf.mxu0
      %v1697 = vadd.f32 %v1530, %v1696
      %v1698 = vpop.f32.mrf.mxu0
      %v1699 = vadd.f32 %v1530, %v1698
      %1700 = vmatmul.bf16.gmra.mxu0 %v1581
      %v1701 = vpop.f32.mrf.mxu0
      %v1702 = vadd.f32 %v1530, %v1701
      %v1703 = vpop.f32.mrf.mxu0
      %v1704 = vadd.f32 %v1530, %v1703
      %1705 = vmatmul.bf16.gmra.mxu0 %v1584
      %v1706 = vpop.f32.mrf.mxu0
      %v1707 = vadd.f32 %v1530, %v1706
      %v1708 = vpop.f32.mrf.mxu0
      %v1709 = vadd.f32 %v1530, %v1708
      %1710 = vmatmul.bf16.gmra.mxu0 %v1587
      %v1711 = vpop.f32.mrf.mxu0
      %v1712 = vadd.f32 %v1530, %v1711
      %v1713 = vpop.f32.mrf.mxu0
      %v1714 = vadd.f32 %v1530, %v1713
      %1715 = vmatmul.bf16.gmra.mxu0 %v1590
      %v1716 = vpop.f32.mrf.mxu0
      %v1717 = vadd.f32 %v1530, %v1716
      %v1718 = vpop.f32.mrf.mxu0
      %v1719 = vadd.f32 %v1530, %v1718
      %1720 = vmatmul.bf16.gmra.mxu0 %v1593
      %v1721 = vpop.f32.mrf.mxu0
      %v1722 = vadd.f32 %v1530, %v1721
      %v1723 = vpop.f32.mrf.mxu0
      %v1724 = vadd.f32 %v1530, %v1723
      %1725 = vmatmul.bf16.gmra.mxu0 %v1596
      %v1726 = vpop.f32.mrf.mxu0
      %v1727 = vadd.f32 %v1530, %v1726
      %v1728 = vpop.f32.mrf.mxu0
      %v1729 = vadd.f32 %v1530, %v1728
      %1730 = vmatmul.bf16.gmra.mxu0 %v1599
      %v1731 = vpop.f32.mrf.mxu0
      %v1732 = vadd.f32 %v1530, %v1731
      %v1733 = vpop.f32.mrf.mxu0
      %v1734 = vadd.f32 %v1530, %v1733
      %1735 = vmatmul.bf16.gmra.mxu0 %v1602
      %v1736 = vpop.f32.mrf.mxu0
      %v1737 = vadd.f32 %v1530, %v1736
      %v1738 = vpop.f32.mrf.mxu0
      %v1739 = vadd.f32 %v1530, %v1738
      %1740 = vmatmul.bf16.gmra.mxu0 %v1605
      %v1741 = vpop.f32.mrf.mxu0
      %v1742 = vadd.f32 %v1530, %v1741
      %v1743 = vpop.f32.mrf.mxu0
      %v1744 = vadd.f32 %v1530, %v1743
      %1745 = vmatmul.bf16.gmra.mxu0 %v1608
      %v1746 = vpop.f32.mrf.mxu0
      %v1747 = vadd.f32 %v1530, %v1746
      %v1748 = vpop.f32.mrf.mxu0
      %v1749 = vadd.f32 %v1530, %v1748
      %1750 = vmatmul.bf16.gmra.mxu0 %v1611
      %v1751 = vpop.f32.mrf.mxu0
      %v1752 = vadd.f32 %v1530, %v1751
      %v1753 = vpop.f32.mrf.mxu0
      %v1754 = vadd.f32 %v1530, %v1753
      %1755 = vmatmul.bf16.gmra.mxu0 %v1614
      %v1756 = vpop.f32.mrf.mxu0
      %v1757 = vadd.f32 %v1530, %v1756
      %v1758 = vpop.f32.mrf.mxu0
      %v1759 = vadd.f32 %v1530, %v1758
      %1760 = vmatmul.bf16.gmra.mxu0 %v1617
      %v1761 = vpop.f32.mrf.mxu0
      %v1762 = vadd.f32 %v1530, %v1761
      %v1763 = vpop.f32.mrf.mxu0
      %v1764 = vadd.f32 %v1530, %v1763
      %1765 = vmatmul.bf16.gmra.mxu0 %v1620
      %v1766 = vpop.f32.mrf.mxu0
      %v1767 = vadd.f32 %v1530, %v1766
      %v1768 = vpop.f32.mrf.mxu0
      %v1769 = vadd.f32 %v1530, %v1768
      %1770 = vmatmul.bf16.gmra.mxu0 %v1623
      %v1771 = vpop.f32.mrf.mxu0
      %v1772 = vadd.f32 %v1530, %v1771
      %v1773 = vpop.f32.mrf.mxu0
      %v1774 = vadd.f32 %v1530, %v1773
      %1775 = vmatmul.bf16.gmra.mxu0 %v1626
      %v1776 = vpop.f32.mrf.mxu0
      %v1777 = vadd.f32 %v1530, %v1776
      %v1778 = vpop.f32.mrf.mxu0
      %v1779 = vadd.f32 %v1530, %v1778
      %1780 = vmatmul.bf16.gmra.mxu0 %v1629
      %v1781 = vpop.f32.mrf.mxu0
      %v1782 = vadd.f32 %v1530, %v1781
      %v1783 = vpop.f32.mrf.mxu0
      %v1784 = vadd.f32 %v1530, %v1783
      %1785 = vmatmul.bf16.gmra.mxu0 %v1632
      %v1786 = vpop.f32.mrf.mxu0
      %v1787 = vadd.f32 %v1530, %v1786
      %v1788 = vpop.f32.mrf.mxu0
      %v1789 = vadd.f32 %v1530, %v1788
      %1790 = vmatmul.bf16.gmra.mxu0 %v1635
      %v1791 = vpop.f32.mrf.mxu0
      %v1792 = vadd.f32 %v1530, %v1791
      %v1793 = vpop.f32.mrf.mxu0
      %v1794 = vadd.f32 %v1530, %v1793
      %1795 = vmatmul.bf16.gmra.mxu0 %v1638
      %v1796 = vpop.f32.mrf.mxu0
      %v1797 = vadd.f32 %v1530, %v1796
      %v1798 = vpop.f32.mrf.mxu0
      %v1799 = vadd.f32 %v1530, %v1798
      %1800 = vmatmul.bf16.gmra.mxu0 %v1641
      %v1801 = vpop.f32.mrf.mxu0
      %v1802 = vadd.f32 %v1530, %v1801
      %v1803 = vpop.f32.mrf.mxu0
      %v1804 = vadd.f32 %v1530, %v1803
      %1805 = vmatmul.bf16.gmra.mxu0 %v1644
      %v1806 = vpop.f32.mrf.mxu0
      %v1807 = vadd.f32 %v1530, %v1806
      %v1808 = vpop.f32.mrf.mxu0
      %v1809 = vadd.f32 %v1530, %v1808
      %1810 = vmatmul.bf16.gmra.mxu0 %v1647
      %v1811 = vpop.f32.mrf.mxu0
      %v1812 = vadd.f32 %v1530, %v1811
      %v1813 = vpop.f32.mrf.mxu0
      %v1814 = vadd.f32 %v1530, %v1813
      %1815 = vmatmul.bf16.gmra.mxu0 %v1650
      %v1816 = vpop.f32.mrf.mxu0
      %v1817 = vadd.f32 %v1530, %v1816
      %v1818 = vpop.f32.mrf.mxu0
      %v1819 = vadd.f32 %v1530, %v1818
      %1820 = vdwg.mxu0
      %v1821 = vmax.f32 %v1662, 0.0
      %v1822 = vmax.f32 %v1664, 0.0
      %v1823 = vmax.f32 %v1667, 0.0
      %v1824 = vmax.f32 %v1669, 0.0
      %v1825 = vmax.f32 %v1672, 0.0
      %v1826 = vmax.f32 %v1674, 0.0
      %v1827 = vmax.f32 %v1677, 0.0
      %v1828 = vmax.f32 %v1679, 0.0
      %v1829 = vmax.f32 %v1682, 0.0
      %v1830 = vmax.f32 %v1684, 0.0
      %v1831 = vmax.f32 %v1687, 0.0
      %v1832 = vmax.f32 %v1689, 0.0
      %v1833 = vmax.f32 %v1692, 0.0
      %v1834 = vmax.f32 %v1694, 0.0
      %v1835 = vmax.f32 %v1697, 0.0
      %v1836 = vmax.f32 %v1699, 0.0
      %v1837 = vmax.f32 %v1702, 0.0
      %v1838 = vmax.f32 %v1704, 0.0
      %v1839 = vmax.f32 %v1707, 0.0
      %v1840 = vmax.f32 %v1709, 0.0
      %v1841 = vmax.f32 %v1712, 0.0
      %v1842 = vmax.f32 %v1714, 0.0
      %v1843 = vmax.f32 %v1717, 0.0
      %v1844 = vmax.f32 %v1719, 0.0
      %v1845 = vmax.f32 %v1722, 0.0
      %v1846 = vmax.f32 %v1724, 0.0
      %v1847 = vmax.f32 %v1727, 0.0
      %v1848 = vmax.f32 %v1729, 0.0
      %v1849 = vmax.f32 %v1732, 0.0
      %v1850 = vmax.f32 %v1734, 0.0
      %v1851 = vmax.f32 %v1737, 0.0
      %v1852 = vmax.f32 %v1739, 0.0
      %v1853 = vmax.f32 %v1742, 0.0
      %v1854 = vmax.f32 %v1744, 0.0
      %v1855 = vmax.f32 %v1747, 0.0
      %v1856 = vmax.f32 %v1749, 0.0
      %v1857 = vmax.f32 %v1752, 0.0
      %v1858 = vmax.f32 %v1754, 0.0
      %v1859 = vmax.f32 %v1757, 0.0
      %v1860 = vmax.f32 %v1759, 0.0
      %v1861 = vmax.f32 %v1762, 0.0
      %v1862 = vmax.f32 %v1764, 0.0
      %v1863 = vmax.f32 %v1767, 0.0
      %v1864 = vmax.f32 %v1769, 0.0
      %v1865 = vmax.f32 %v1772, 0.0
      %v1866 = vmax.f32 %v1774, 0.0
      %v1867 = vmax.f32 %v1777, 0.0
      %v1868 = vmax.f32 %v1779, 0.0
      %v1869 = vmax.f32 %v1782, 0.0
      %v1870 = vmax.f32 %v1784, 0.0
      %v1871 = vmax.f32 %v1787, 0.0
      %v1872 = vmax.f32 %v1789, 0.0
      %v1873 = vmax.f32 %v1792, 0.0
      %v1874 = vmax.f32 %v1794, 0.0
      %v1875 = vmax.f32 %v1797, 0.0
      %v1876 = vmax.f32 %v1799, 0.0
      %v1877 = vmax.f32 %v1802, 0.0
      %v1878 = vmax.f32 %v1804, 0.0
      %v1879 = vmax.f32 %v1807, 0.0
      %v1880 = vmax.f32 %v1809, 0.0
      %v1881 = vmax.f32 %v1812, 0.0
      %v1882 = vmax.f32 %v1814, 0.0
      %v1883 = vmax.f32 %v1817, 0.0
      %v1884 = vmax.f32 %v1819, 0.0
      %v1885 = vpack.c.bf16 %v1822, %v1821
      %v1886 = vpack.c.bf16 %v1824, %v1823
      %v1887 = vpack.c.bf16 %v1826, %v1825
      %v1888 = vpack.c.bf16 %v1828, %v1827
      %v1889 = vpack.c.bf16 %v1830, %v1829
      %v1890 = vpack.c.bf16 %v1832, %v1831
      %v1891 = vpack.c.bf16 %v1834, %v1833
      %v1892 = vpack.c.bf16 %v1836, %v1835
      %v1893 = vpack.c.bf16 %v1838, %v1837
      %v1894 = vpack.c.bf16 %v1840, %v1839
      %v1895 = vpack.c.bf16 %v1842, %v1841
      %v1896 = vpack.c.bf16 %v1844, %v1843
      %v1897 = vpack.c.bf16 %v1846, %v1845
      %v1898 = vpack.c.bf16 %v1848, %v1847
      %v1899 = vpack.c.bf16 %v1850, %v1849
      %v1900 = vpack.c.bf16 %v1852, %v1851
      %v1901 = vpack.c.bf16 %v1854, %v1853
      %v1902 = vpack.c.bf16 %v1856, %v1855
      %v1903 = vpack.c.bf16 %v1858, %v1857
      %v1904 = vpack.c.bf16 %v1860, %v1859
      %v1905 = vpack.c.bf16 %v1862, %v1861
      %v1906 = vpack.c.bf16 %v1864, %v1863
      %v1907 = vpack.c.bf16 %v1866, %v1865
      %v1908 = vpack.c.bf16 %v1868, %v1867
      %v1909 = vpack.c.bf16 %v1870, %v1869
      %v1910 = vpack.c.bf16 %v1872, %v1871
      %v1911 = vpack.c.bf16 %v1874, %v1873
      %v1912 = vpack.c.bf16 %v1876, %v1875
      %v1913 = vpack.c.bf16 %v1878, %v1877
      %v1914 = vpack.c.bf16 %v1880, %v1879
      %v1915 = vpack.c.bf16 %v1882, %v1881
      %v1916 = vpack.c.bf16 %v1884, %v1883
      %v1917 = vld [vmem:[%s9] sm:$0xf]
      %v1918 = vld [vmem:[%s9 + $0x4] sm:$0xf]
      %v1919 = vld [vmem:[%s9 + $0x8] sm:$0xf]
      %v1920 = vld [vmem:[%s9 + $0xc] sm:$0xf]
      %v1921 = vld [vmem:[%s10] sm:$0x1]
      %v1923 = vperm.slane %v1921, 0
      %v1929 = vunpack.c.l.b16 %v1917
      %v1930 = vunpack.c.l.b16 %v1918
      %v1931 = vunpack.c.l.b16 %v1919
      %v1932 = vunpack.c.l.b16 %v1920
      %v1933 = vpack.c.b16 %v1930, %v1929
      %v1934 = vpack.c.b16 %v1932, %v1931
      %v1938 = vsel %vm507, %v1885, 0
      %v1941 = vsel %vm507, %v1886, 0
      %v1944 = vsel %vm507, %v1887, 0
      %v1947 = vsel %vm507, %v1888, 0
      %v1950 = vsel %vm507, %v1889, 0
      %v1953 = vsel %vm507, %v1890, 0
      %v1956 = vsel %vm507, %v1891, 0
      %v1959 = vsel %vm507, %v1892, 0
      %v1962 = vsel %vm507, %v1893, 0
      %v1965 = vsel %vm507, %v1894, 0
      %v1968 = vsel %vm507, %v1895, 0
      %v1971 = vsel %vm507, %v1896, 0
      %v1974 = vsel %vm507, %v1897, 0
      %v1977 = vsel %vm507, %v1898, 0
      %v1980 = vsel %vm507, %v1899, 0
      %v1983 = vsel %vm507, %v1900, 0
      %v1986 = vsel %vm507, %v1901, 0
      %v1989 = vsel %vm507, %v1902, 0
      %v1992 = vsel %vm507, %v1903, 0
      %v1995 = vsel %vm507, %v1904, 0
      %v1998 = vsel %vm507, %v1905, 0
      %v2001 = vsel %vm507, %v1906, 0
      %v2004 = vsel %vm507, %v1907, 0
      %v2007 = vsel %vm507, %v1908, 0
      %v2010 = vsel %vm507, %v1909, 0
      %v2013 = vsel %vm507, %v1910, 0
      %v2016 = vsel %vm507, %v1911, 0
      %v2019 = vsel %vm507, %v1912, 0
      %v2022 = vsel %vm507, %v1913, 0
      %v2025 = vsel %vm507, %v1914, 0
      %v2028 = vsel %vm507, %v1915, 0
      %v2031 = vsel %vm507, %v1916, 0
      %2033 = vmatpush.bf16.msra.mxu0 0
      %2034 = vmatpush.bf16.msra.mxu0 0
      %2035 = vmatpush.bf16.msra.mxu0 0
      %2036 = vmatpush.bf16.msra.mxu0 0
      %2037 = vmatpush.bf16.msra.mxu0 0
      %2038 = vmatpush.bf16.msra.mxu0 0
      %2039 = vmatpush.bf16.msra.mxu0 %v1934
      %2040 = vmatpush.bf16.msra.mxu0 %v1933
      %2041 = vmatmul.bf16.gmra.mxu0 %v1938
      %v2042 = vpop.f32.mrf.mxu0
      %v2043 = vadd.f32 %v1923, %v2042
      %v2044 = vpop.f32.mrf.mxu0
      %v2045 = vadd.f32 %v1923, %v2044
      %2046 = vmatmul.bf16.gmra.mxu0 %v1941
      %v2047 = vpop.f32.mrf.mxu0
      %v2048 = vadd.f32 %v1923, %v2047
      %v2049 = vpop.f32.mrf.mxu0
      %v2050 = vadd.f32 %v1923, %v2049
      %2051 = vmatmul.bf16.gmra.mxu0 %v1944
      %v2052 = vpop.f32.mrf.mxu0
      %v2053 = vadd.f32 %v1923, %v2052
      %v2054 = vpop.f32.mrf.mxu0
      %v2055 = vadd.f32 %v1923, %v2054
      %2056 = vmatmul.bf16.gmra.mxu0 %v1947
      %v2057 = vpop.f32.mrf.mxu0
      %v2058 = vadd.f32 %v1923, %v2057
      %v2059 = vpop.f32.mrf.mxu0
      %v2060 = vadd.f32 %v1923, %v2059
      %2061 = vmatmul.bf16.gmra.mxu0 %v1950
      %v2062 = vpop.f32.mrf.mxu0
      %v2063 = vadd.f32 %v1923, %v2062
      %v2064 = vpop.f32.mrf.mxu0
      %v2065 = vadd.f32 %v1923, %v2064
      %2066 = vmatmul.bf16.gmra.mxu0 %v1953
      %v2067 = vpop.f32.mrf.mxu0
      %v2068 = vadd.f32 %v1923, %v2067
      %v2069 = vpop.f32.mrf.mxu0
      %v2070 = vadd.f32 %v1923, %v2069
      %2071 = vmatmul.bf16.gmra.mxu0 %v1956
      %v2072 = vpop.f32.mrf.mxu0
      %v2073 = vadd.f32 %v1923, %v2072
      %v2074 = vpop.f32.mrf.mxu0
      %v2075 = vadd.f32 %v1923, %v2074
      %2076 = vmatmul.bf16.gmra.mxu0 %v1959
      %v2077 = vpop.f32.mrf.mxu0
      %v2078 = vadd.f32 %v1923, %v2077
      %v2079 = vpop.f32.mrf.mxu0
      %v2080 = vadd.f32 %v1923, %v2079
      %2081 = vmatmul.bf16.gmra.mxu0 %v1962
      %v2082 = vpop.f32.mrf.mxu0
      %v2083 = vadd.f32 %v1923, %v2082
      %v2084 = vpop.f32.mrf.mxu0
      %v2085 = vadd.f32 %v1923, %v2084
      %2086 = vmatmul.bf16.gmra.mxu0 %v1965
      %v2087 = vpop.f32.mrf.mxu0
      %v2088 = vadd.f32 %v1923, %v2087
      %v2089 = vpop.f32.mrf.mxu0
      %v2090 = vadd.f32 %v1923, %v2089
      %2091 = vmatmul.bf16.gmra.mxu0 %v1968
      %v2092 = vpop.f32.mrf.mxu0
      %v2093 = vadd.f32 %v1923, %v2092
      %v2094 = vpop.f32.mrf.mxu0
      %v2095 = vadd.f32 %v1923, %v2094
      %2096 = vmatmul.bf16.gmra.mxu0 %v1971
      %v2097 = vpop.f32.mrf.mxu0
      %v2098 = vadd.f32 %v1923, %v2097
      %v2099 = vpop.f32.mrf.mxu0
      %v2100 = vadd.f32 %v1923, %v2099
      %2101 = vmatmul.bf16.gmra.mxu0 %v1974
      %v2102 = vpop.f32.mrf.mxu0
      %v2103 = vadd.f32 %v1923, %v2102
      %v2104 = vpop.f32.mrf.mxu0
      %v2105 = vadd.f32 %v1923, %v2104
      %2106 = vmatmul.bf16.gmra.mxu0 %v1977
      %v2107 = vpop.f32.mrf.mxu0
      %v2108 = vadd.f32 %v1923, %v2107
      %v2109 = vpop.f32.mrf.mxu0
      %v2110 = vadd.f32 %v1923, %v2109
      %2111 = vmatmul.bf16.gmra.mxu0 %v1980
      %v2112 = vpop.f32.mrf.mxu0
      %v2113 = vadd.f32 %v1923, %v2112
      %v2114 = vpop.f32.mrf.mxu0
      %v2115 = vadd.f32 %v1923, %v2114
      %2116 = vmatmul.bf16.gmra.mxu0 %v1983
      %v2117 = vpop.f32.mrf.mxu0
      %v2118 = vadd.f32 %v1923, %v2117
      %v2119 = vpop.f32.mrf.mxu0
      %v2120 = vadd.f32 %v1923, %v2119
      %2121 = vmatmul.bf16.gmra.mxu0 %v1986
      %v2122 = vpop.f32.mrf.mxu0
      %v2123 = vadd.f32 %v1923, %v2122
      %v2124 = vpop.f32.mrf.mxu0
      %v2125 = vadd.f32 %v1923, %v2124
      %2126 = vmatmul.bf16.gmra.mxu0 %v1989
      %v2127 = vpop.f32.mrf.mxu0
      %v2128 = vadd.f32 %v1923, %v2127
      %v2129 = vpop.f32.mrf.mxu0
      %v2130 = vadd.f32 %v1923, %v2129
      %2131 = vmatmul.bf16.gmra.mxu0 %v1992
      %v2132 = vpop.f32.mrf.mxu0
      %v2133 = vadd.f32 %v1923, %v2132
      %v2134 = vpop.f32.mrf.mxu0
      %v2135 = vadd.f32 %v1923, %v2134
      %2136 = vmatmul.bf16.gmra.mxu0 %v1995
      %v2137 = vpop.f32.mrf.mxu0
      %v2138 = vadd.f32 %v1923, %v2137
      %v2139 = vpop.f32.mrf.mxu0
      %v2140 = vadd.f32 %v1923, %v2139
      %2141 = vmatmul.bf16.gmra.mxu0 %v1998
      %v2142 = vpop.f32.mrf.mxu0
      %v2143 = vadd.f32 %v1923, %v2142
      %v2144 = vpop.f32.mrf.mxu0
      %v2145 = vadd.f32 %v1923, %v2144
      %2146 = vmatmul.bf16.gmra.mxu0 %v2001
      %v2147 = vpop.f32.mrf.mxu0
      %v2148 = vadd.f32 %v1923, %v2147
      %v2149 = vpop.f32.mrf.mxu0
      %v2150 = vadd.f32 %v1923, %v2149
      %2151 = vmatmul.bf16.gmra.mxu0 %v2004
      %v2152 = vpop.f32.mrf.mxu0
      %v2153 = vadd.f32 %v1923, %v2152
      %v2154 = vpop.f32.mrf.mxu0
      %v2155 = vadd.f32 %v1923, %v2154
      %2156 = vmatmul.bf16.gmra.mxu0 %v2007
      %v2157 = vpop.f32.mrf.mxu0
      %v2158 = vadd.f32 %v1923, %v2157
      %v2159 = vpop.f32.mrf.mxu0
      %v2160 = vadd.f32 %v1923, %v2159
      %2161 = vmatmul.bf16.gmra.mxu0 %v2010
      %v2162 = vpop.f32.mrf.mxu0
      %v2163 = vadd.f32 %v1923, %v2162
      %v2164 = vpop.f32.mrf.mxu0
      %v2165 = vadd.f32 %v1923, %v2164
      %2166 = vmatmul.bf16.gmra.mxu0 %v2013
      %v2167 = vpop.f32.mrf.mxu0
      %v2168 = vadd.f32 %v1923, %v2167
      %v2169 = vpop.f32.mrf.mxu0
      %v2170 = vadd.f32 %v1923, %v2169
      %2171 = vmatmul.bf16.gmra.mxu0 %v2016
      %v2172 = vpop.f32.mrf.mxu0
      %v2173 = vadd.f32 %v1923, %v2172
      %v2174 = vpop.f32.mrf.mxu0
      %v2175 = vadd.f32 %v1923, %v2174
      %2176 = vmatmul.bf16.gmra.mxu0 %v2019
      %v2177 = vpop.f32.mrf.mxu0
      %v2178 = vadd.f32 %v1923, %v2177
      %v2179 = vpop.f32.mrf.mxu0
      %v2180 = vadd.f32 %v1923, %v2179
      %2181 = vmatmul.bf16.gmra.mxu0 %v2022
      %v2182 = vpop.f32.mrf.mxu0
      %v2183 = vadd.f32 %v1923, %v2182
      %v2184 = vpop.f32.mrf.mxu0
      %v2185 = vadd.f32 %v1923, %v2184
      %2186 = vmatmul.bf16.gmra.mxu0 %v2025
      %v2187 = vpop.f32.mrf.mxu0
      %v2188 = vadd.f32 %v1923, %v2187
      %v2189 = vpop.f32.mrf.mxu0
      %v2190 = vadd.f32 %v1923, %v2189
      %2191 = vmatmul.bf16.gmra.mxu0 %v2028
      %v2192 = vpop.f32.mrf.mxu0
      %v2193 = vadd.f32 %v1923, %v2192
      %v2194 = vpop.f32.mrf.mxu0
      %v2195 = vadd.f32 %v1923, %v2194
      %2196 = vmatmul.bf16.gmra.mxu0 %v2031
      %v2197 = vpop.f32.mrf.mxu0
      %v2198 = vadd.f32 %v1923, %v2197
      %v2199 = vpop.f32.mrf.mxu0
      %v2200 = vadd.f32 %v1923, %v2199
      %2201 = vdwg.mxu0
      %2202 = vst.msk [vmem:[%s388] sm:$0xff] %vm507, %v2043
      %2203 = vst.msk [vmem:[%s388 + $0x8] sm:$0xff] %vm507, %v2045
      %2204 = vst.msk [vmem:[%s388 + $0x10] sm:$0xff] %vm507, %v2048
      %2205 = vst.msk [vmem:[%s388 + $0x18] sm:$0xff] %vm507, %v2050
      %2206 = vst.msk [vmem:[%s388 + $0x20] sm:$0xff] %vm507, %v2053
      %2207 = vst.msk [vmem:[%s388 + $0x28] sm:$0xff] %vm507, %v2055
      %2208 = vst.msk [vmem:[%s388 + $0x30] sm:$0xff] %vm507, %v2058
      %2209 = vst.msk [vmem:[%s388 + $0x38] sm:$0xff] %vm507, %v2060
      %2210 = vst.msk [vmem:[%s388 + $0x40] sm:$0xff] %vm507, %v2063
      %2211 = vst.msk [vmem:[%s388 + $0x48] sm:$0xff] %vm507, %v2065
      %2212 = vst.msk [vmem:[%s388 + $0x50] sm:$0xff] %vm507, %v2068
      %2213 = vst.msk [vmem:[%s388 + $0x58] sm:$0xff] %vm507, %v2070
      %2214 = vst.msk [vmem:[%s388 + $0x60] sm:$0xff] %vm507, %v2073
      %2215 = vst.msk [vmem:[%s388 + $0x68] sm:$0xff] %vm507, %v2075
      %2216 = vst.msk [vmem:[%s388 + $0x70] sm:$0xff] %vm507, %v2078
      %2217 = vst.msk [vmem:[%s388 + $0x78] sm:$0xff] %vm507, %v2080
      %2218 = vst.msk [vmem:[%s388 + $0x80] sm:$0xff] %vm507, %v2083
      %2219 = vst.msk [vmem:[%s388 + $0x88] sm:$0xff] %vm507, %v2085
      %2220 = vst.msk [vmem:[%s388 + $0x90] sm:$0xff] %vm507, %v2088
      %2221 = vst.msk [vmem:[%s388 + $0x98] sm:$0xff] %vm507, %v2090
      %2222 = vst.msk [vmem:[%s388 + $0xa0] sm:$0xff] %vm507, %v2093
      %2223 = vst.msk [vmem:[%s388 + $0xa8] sm:$0xff] %vm507, %v2095
      %2224 = vst.msk [vmem:[%s388 + $0xb0] sm:$0xff] %vm507, %v2098
      %2225 = vst.msk [vmem:[%s388 + $0xb8] sm:$0xff] %vm507, %v2100
      %2226 = vst.msk [vmem:[%s388 + $0xc0] sm:$0xff] %vm507, %v2103
      %2227 = vst.msk [vmem:[%s388 + $0xc8] sm:$0xff] %vm507, %v2105
      %2228 = vst.msk [vmem:[%s388 + $0xd0] sm:$0xff] %vm507, %v2108
      %2229 = vst.msk [vmem:[%s388 + $0xd8] sm:$0xff] %vm507, %v2110
      %2230 = vst.msk [vmem:[%s388 + $0xe0] sm:$0xff] %vm507, %v2113
      %2231 = vst.msk [vmem:[%s388 + $0xe8] sm:$0xff] %vm507, %v2115
      %2232 = vst.msk [vmem:[%s388 + $0xf0] sm:$0xff] %vm507, %v2118
      %2233 = vst.msk [vmem:[%s388 + $0xf8] sm:$0xff] %vm507, %v2120
      %2234 = vst.msk [vmem:[%s388 + $0x100] sm:$0xff] %vm507, %v2123
      %2235 = vst.msk [vmem:[%s388 + $0x108] sm:$0xff] %vm507, %v2125
      %2236 = vst.msk [vmem:[%s388 + $0x110] sm:$0xff] %vm507, %v2128
      %2237 = vst.msk [vmem:[%s388 + $0x118] sm:$0xff] %vm507, %v2130
      %2238 = vst.msk [vmem:[%s388 + $0x120] sm:$0xff] %vm507, %v2133
      %2239 = vst.msk [vmem:[%s388 + $0x128] sm:$0xff] %vm507, %v2135
      %2240 = vst.msk [vmem:[%s388 + $0x130] sm:$0xff] %vm507, %v2138
      %2241 = vst.msk [vmem:[%s388 + $0x138] sm:$0xff] %vm507, %v2140
      %2242 = vst.msk [vmem:[%s388 + $0x140] sm:$0xff] %vm507, %v2143
      %2243 = vst.msk [vmem:[%s388 + $0x148] sm:$0xff] %vm507, %v2145
      %2244 = vst.msk [vmem:[%s388 + $0x150] sm:$0xff] %vm507, %v2148
      %2245 = vst.msk [vmem:[%s388 + $0x158] sm:$0xff] %vm507, %v2150
      %2246 = vst.msk [vmem:[%s388 + $0x160] sm:$0xff] %vm507, %v2153
      %2247 = vst.msk [vmem:[%s388 + $0x168] sm:$0xff] %vm507, %v2155
      %2248 = vst.msk [vmem:[%s388 + $0x170] sm:$0xff] %vm507, %v2158
      %2249 = vst.msk [vmem:[%s388 + $0x178] sm:$0xff] %vm507, %v2160
      %2250 = vst.msk [vmem:[%s388 + $0x180] sm:$0xff] %vm507, %v2163
      %2251 = vst.msk [vmem:[%s388 + $0x188] sm:$0xff] %vm507, %v2165
      %2252 = vst.msk [vmem:[%s388 + $0x190] sm:$0xff] %vm507, %v2168
      %2253 = vst.msk [vmem:[%s388 + $0x198] sm:$0xff] %vm507, %v2170
      %2254 = vst.msk [vmem:[%s388 + $0x1a0] sm:$0xff] %vm507, %v2173
      %2255 = vst.msk [vmem:[%s388 + $0x1a8] sm:$0xff] %vm507, %v2175
      %2256 = vst.msk [vmem:[%s388 + $0x1b0] sm:$0xff] %vm507, %v2178
      %2257 = vst.msk [vmem:[%s388 + $0x1b8] sm:$0xff] %vm507, %v2180
      %2258 = vst.msk [vmem:[%s388 + $0x1c0] sm:$0xff] %vm507, %v2183
      %2259 = vst.msk [vmem:[%s388 + $0x1c8] sm:$0xff] %vm507, %v2185
      %2260 = vst.msk [vmem:[%s388 + $0x1d0] sm:$0xff] %vm507, %v2188
      %2261 = vst.msk [vmem:[%s388 + $0x1d8] sm:$0xff] %vm507, %v2190
      %2262 = vst.msk [vmem:[%s388 + $0x1e0] sm:$0xff] %vm507, %v2193
      %2263 = vst.msk [vmem:[%s388 + $0x1e8] sm:$0xff] %vm507, %v2195
      %2264 = vst.msk [vmem:[%s388 + $0x1f0] sm:$0xff] %vm507, %v2198
      %2265 = vst.msk [vmem:[%s388 + $0x1f8] sm:$0xff] %vm507, %v2200
      %s2266 = smul.u32 64, %s22
      %p2267 = scmp.lt.s32.totalorder %s2266, 127
      %s2268 = scalar_select %p2267, %s2266, 127
      %s2269 = smul.addr %s2268, 8
      %s2270 = scalar_lea.vmem %s11, %s2269
      // Predicated region
      $region65: #{tpu_custom_call.1} parent=63 // pred_check
        %p2271 = pneg %p276
      $region66: #{tpu_custom_call.1} parent=63 // pred_check_branch
        %2273 = sbr.rel (%p2271) target = $region68
      $region67: #{tpu_custom_call.1} parent=63 // pred_region
        %s2274 = smul.u32 64, %s22
      $region68: #{tpu_custom_call.1} parent=63 // pred_fallthru
        _
    $region64: #{tpu_custom_call.1} parent=5 // pred_fallthru
      _
    %p2275 = scmp.le.s32.totalorder 2, %s17
    // Predicated region
    $region69: #{tpu_custom_call.1} parent=5 // pred_check
      %p2276 = pneg %p2275
    $region70: #{tpu_custom_call.1} parent=5 // pred_check_branch
      %2278 = sbr.rel (%p2276) target = $region72
    $region71: #{tpu_custom_call.1} parent=5 // pred_region
      %s2279 = ssub.s32 %s17, 2
      // Predicated region
      $region73: #{tpu_custom_call.1} parent=71 // pred_check
        %p2280 = pneg %p282
      $region74: #{tpu_custom_call.1} parent=71 // pred_check_branch
        %2282 = sbr.rel (%p2280) target = $region76
      $region75: #{tpu_custom_call.1} parent=71 // pred_region
        %s2283 = smul.u32 64, %s23
        %p2284 = scmp.lt.s32.totalorder %s2283, 127
        %s2285 = scalar_select %p2284, %s2283, 127
        %s2286 = smul.addr %s2285, 8
        %s2287 = scalar_lea.vmem %s11, %s2286
      $region76: #{tpu_custom_call.1} parent=71 // pred_fallthru
        _
    $region72: #{tpu_custom_call.1} parent=5 // pred_fallthru
      _
  $region6: #{tpu_custom_call.1} parent=0 // loop_footer
    %s21 = sadd.s32 1, %s17
  $region7: #{tpu_custom_call.1} parent=0 // loop_footer_branch
    %16 = sbr.rel target = $region3
  $region8: #{tpu_custom_call.1} parent=0 // loop_exit
    _

</llo_original>
